<compile_context>
chip_gen: v5e
topology: v5e:2x2
jax: 0.10.0
libtpu: 0.0.40
codegen_flags: <defaults>
</compile_context>

<pallas_src>
import jax
import jax.numpy as jnp
from jax import lax
from jax.experimental import pallas as pl
from jax.experimental.pallas import tpu as pltpu


def _leaky_relu(x, slope=0.01):
    return jnp.where(x > 0, x, slope * x)


def _round_up(n, m):
    return ((n + m - 1) // m) * m


def _choose_grid(B, *, target_block=2048):
    """Pick (lanes-per-block, grid steps).  Batch is the lane axis -> 128 granule."""
    if B <= 1024:
        # One block: minimal padding; per-step overhead paid once.  (On v7x the
        # second TC idles here, but at this size the kernel is ~1 us anyway.)
        n_steps = 1
    else:
        # >=2 steps so the "parallel" batch axis spreads over v7x's two TCs;
        # even step count for balance; ~target_block lanes per step.
        n_steps = max(2, pl.cdiv(B, target_block))
        if n_steps % 2:
            n_steps += 1
    bb = _round_up(pl.cdiv(B, n_steps), 128)
    return bb, n_steps


def actor_kernel(x_ref, w0_ref, wstk_ref, bstk_ref, wh_ref, hc_ref, out_ref):
    """All tensors are feature-major: features on sublanes, batch on lanes.

    x_ref   : (8, bb)      f32   rows 0:5 = features, rows 5:8 = 0
    w0_ref  : (128, 8)     bf16  layer-0 weight, transposed & K-padded to 8
    wstk_ref: (4, 128, 128) bf16 layers 1..4 weights, transposed
    bstk_ref: (5, 128, 1)  f32   backbone biases as columns
    wh_ref  : (8, 128)     bf16  fused head [a1 | s1_h | r1_h | 0] transposed
    hc_ref  : (8, 8)       f32   col0 = head bias, col1 = a1->s1/r1 base,
                                 col2 = a1->s1/r1 diff
    out_ref : (8, bb)      f32   rows [p0, p1, s1_0, s1_1, r1, 0, 0, 0]
    """
    bf16 = jnp.bfloat16
    f32 = jnp.float32

    # ---- backbone: 5 x (Linear -> LeakyReLU), bf16 on the MXU, f32 accumulate
    x = x_ref[...].astype(bf16)                                    # (8, bb)
    h = jnp.dot(w0_ref[...], x, preferred_element_type=f32) + bstk_ref[0]
    h = _leaky_relu(h).astype(bf16)                                # (128, bb)
    for i in range(4):                                             # unrolled
        h = jnp.dot(wstk_ref[i], h, preferred_element_type=f32) + bstk_ref[i + 1]
        h = _leaky_relu(h).astype(bf16)

    # ---- fused head: rows 0:2 = a1 logits, 2:4 = h-part of s1, 4 = h-part of r1
    pre = jnp.dot(wh_ref[...], h, preferred_element_type=f32) + hc_ref[:, 0:1]

    # 2-class softmax == sigmoid of the logit difference (single EUP op).
    p0 = jax.nn.sigmoid(pre[0:1, :] - pre[1:2, :])                 # (1, bb)
    p1 = 1.0 - p0

    # a1 contribution to s1/r1 folded into one broadcast FMA.
    lin = pre + hc_ref[:, 1:2] + p0 * hc_ref[:, 2:3]               # (8, bb)
    r1 = jax.nn.sigmoid(lin[4:5, :])                               # (1, bb)

    # Assemble rows in place: 0->p0, 1->p1, 2:4->s1 (already in lin), 4->r1.
    row = lax.broadcasted_iota(jnp.int32, lin.shape, 0)
    out_ref[...] = jnp.where(row == 0, p0,
                   jnp.where(row == 1, p1,
                   jnp.where(row == 4, r1, lin)))


def actor_forward(x, packed, *, target_block=2048):
    """x: (B, 5) f32.  Returns (a1 (B,2), s1 (B,2), r1 (B,1))."""
    B = x.shape[0]
    bb, n_steps = _choose_grid(B, target_block=target_block)
    Bp = bb * n_steps

    # Feature-major input: batch on the lane axis; 5 -> 8 feature rows (zeros).
    xT = jnp.zeros((8, Bp), jnp.float32).at[:5, :B].set(x.T)

    w0_t, w_stack, b_stack, wh_t, head_consts = packed

    def const_spec(shape):
        return pl.BlockSpec(shape, lambda i: (0,) * len(shape))

    out = pl.pallas_call(
        actor_kernel,
        out_shape=jax.ShapeDtypeStruct((8, Bp), jnp.float32),
        grid=(n_steps,),
        in_specs=[
            pl.BlockSpec((8, bb), lambda i: (0, i)),   # lane-dense input tile
            const_spec(w0_t.shape),
            const_spec(w_stack.shape),
            const_spec(b_stack.shape),
            const_spec(wh_t.shape),
            const_spec(head_consts.shape),
        ],
        out_specs=pl.BlockSpec((8, bb), lambda i: (0, i)),   # lane-dense output
        compiler_params=pltpu.CompilerParams(
            dimension_semantics=("parallel",)),
    )(xT, w0_t, w_stack, b_stack, wh_t, head_consts)

    a1 = out[0:2, :B].T
    s1 = out[2:4, :B].T
    r1 = out[4:5, :B].T
    return a1, s1, r1


# ----------------------------- host-side setup -----------------------------

def init_linear(key, fan_in, fan_out):
    kw, kb = jax.random.split(key)
    bound = 1.0 / (fan_in ** 0.5)
    w = jax.random.uniform(kw, (fan_in, fan_out), jnp.float32, -bound, bound)
    b = jax.random.uniform(kb, (1, fan_out), jnp.float32, -bound, bound)
    return w, b


def make_params(key):
    keys = jax.random.split(key, 8)
    layers = []
    dims = [(5, 128), (128, 128), (128, 128), (128, 128), (128, 128)]
    for k, (fi, fo) in zip(keys[:5], dims):
        layers.extend(init_linear(k, fi, fo))
    wa, ba = init_linear(keys[5], 128, 2)     # a1 head
    ws, bs = init_linear(keys[6], 130, 2)     # s1 head (input = [a1, h])
    wr, br = init_linear(keys[7], 130, 1)     # r1 head (input = [a1, h])
    return tuple(layers) + (wa, ba, ws, bs, wr, br)


def pack_params(params):
    """Repack f32 (fan_in, fan_out) params into 5 feature-major kernel operands."""
    (w0, b0, w1, b1, w2, b2, w3, b3, w4, b4, wa, ba, ws, bs, wr, br) = params
    bf = jnp.bfloat16
    f32 = jnp.float32

    # Layer 0: transposed and K-padded 5 -> 8 (matches the zero-padded x rows).
    w0_t = jnp.zeros((128, 8), f32).at[:, :5].set(w0.T).astype(bf)

    # Layers 1..4: transposed, stacked into one operand.
    w_stack = jnp.stack([w1.T, w2.T, w3.T, w4.T]).astype(bf)          # (4,128,128)

    # Backbone biases as columns, stacked.
    b_stack = jnp.stack([b.reshape(128, 1)
                         for b in (b0, b1, b2, b3, b4)]).astype(f32)  # (5,128,1)

    # Fused head weight (transposed): rows 0:2 a1, 2:4 s1 h-part, 4 r1 h-part.
    wh_t = jnp.zeros((8, 128), f32)
    wh_t = wh_t.at[0:2, :].set(wa.T)
    wh_t = wh_t.at[2:4, :].set(ws[2:, :].T)
    wh_t = wh_t.at[4:5, :].set(wr[2:, :].T)
    wh_t = wh_t.astype(bf)

    # Head constants as columns: [bias | a1->s1/r1 base | a1->s1/r1 diff].
    bh = (jnp.zeros((8,), f32)
          .at[0:2].set(ba[0]).at[2:4].set(bs[0]).at[4].set(br[0, 0]))
    base = (jnp.zeros((8,), f32)
            .at[2:4].set(ws[1, :]).at[4].set(wr[1, 0]))
    diff = (jnp.zeros((8,), f32)
            .at[2:4].set(ws[0, :] - ws[1, :]).at[4].set(wr[0, 0] - wr[1, 0]))
    head_consts = (jnp.zeros((8, 8), f32)
                   .at[:, 0].set(bh).at[:, 1].set(base).at[:, 2].set(diff))

    return (w0_t, w_stack, b_stack, wh_t, head_consts)


def reference_forward(x, params):
    """Pure-JAX f32 reference with the exact PyTorch Actor semantics."""
    (w0, b0, w1, b1, w2, b2, w3, b3, w4, b4, wa, ba, ws, bs, wr, br) = params
    h = x
    for w, b in [(w0, b0), (w1, b1), (w2, b2), (w3, b3), (w4, b4)]:
        h = _leaky_relu(h @ w + b)
    a1 = jax.nn.softmax(h @ wa + ba, axis=1)
    act_state = jnp.concatenate([a1, h], axis=1)   # [a1, backbone_out] like PyTorch
    s1 = act_state @ ws + bs
    r1 = jax.nn.sigmoid(act_state @ wr + br)
    return a1, s1, r1


if __name__ == "__main__":
    key = jax.random.PRNGKey(0)
    kx, kp = jax.random.split(key)

    params = make_params(kp)
    packed = pack_params(params)

    # B=8 / B=300: single-step grids (128 / 384 lane blocks).
    # B=2500: two parallel grid steps of 1280 lanes (exercises the multi-step path).
    for B in (8, 300, 2500):
        x = jax.random.normal(jax.random.fold_in(kx, B), (B, 5), jnp.float32)

        a1, s1, r1 = actor_forward(x, packed)
        jax.block_until_ready((a1, s1, r1))

        ra1, rs1, rr1 = reference_forward(x, params)
        for name, got, want in (("a1", a1, ra1), ("s1", s1, rs1), ("r1", r1, rr1)):
            assert got.shape == want.shape, f"{name} shape mismatch at B={B}"
            err = float(jnp.max(jnp.abs(got - want)))
            assert err < 1e-2, f"{name} mismatch at B={B}: max abs err {err}"

    print("KERNEL_OK")
</pallas_src>

<mosaic_0001>
module attributes {stable_mosaic.version = 11 : i64} {
  func.func @actor_kernel(%arg0: i32, %arg1: memref<8x128xf32, #tpu.memory_space<vmem>>, %arg2: memref<128x8xbf16, #tpu.memory_space<vmem>>, %arg3: memref<4x128x128xbf16, #tpu.memory_space<vmem>>, %arg4: memref<5x128x1xf32, #tpu.memory_space<vmem>>, %arg5: memref<8x128xbf16, #tpu.memory_space<vmem>>, %arg6: memref<8x8xf32, #tpu.memory_space<vmem>>, %arg7: memref<8x128xf32, #tpu.memory_space<vmem>>) attributes {dimension_semantics = [#tpu.dimension_semantics<parallel>], iteration_bounds = array<i64: 1>, scalar_prefetch = 0 : i64, scratch_operands = 0 : i64, tpu.core_type = #tpu.core_type<tc>, window_params = [{transform_indices = @transform_0, window_bounds = array<i64: 8, 128>}, {pipeline_mode = #tpu.pipeline_mode<synchronous>, transform_indices = @transform_1, window_bounds = array<i64: 128, 8>}, {pipeline_mode = #tpu.pipeline_mode<synchronous>, transform_indices = @transform_2, window_bounds = array<i64: 4, 128, 128>}, {pipeline_mode = #tpu.pipeline_mode<synchronous>, transform_indices = @transform_3, window_bounds = array<i64: 5, 128, 1>}, {pipeline_mode = #tpu.pipeline_mode<synchronous>, transform_indices = @transform_4, window_bounds = array<i64: 8, 128>}, {pipeline_mode = #tpu.pipeline_mode<synchronous>, transform_indices = @transform_5, window_bounds = array<i64: 8, 8>}, {transform_indices = @transform_6, window_bounds = array<i64: 8, 128>}]} {
    %c0 = arith.constant 0 : index
    %c0_0 = arith.constant 0 : index
    %0 = vector.load %arg1[%c0, %c0_0] : memref<8x128xf32, #tpu.memory_space<vmem>>, vector<8x128xf32>
    %1 = arith.truncf %0 : vector<8x128xf32> to vector<8x128xbf16>
    %c0_1 = arith.constant 0 : index
    %c0_2 = arith.constant 0 : index
    %2 = vector.load %arg2[%c0_1, %c0_2] : memref<128x8xbf16, #tpu.memory_space<vmem>>, vector<128x8xbf16>
    %cst = arith.constant dense<0.000000e+00> : vector<128x128xf32>
    %3 = tpu.matmul %2, %1, %cst {dimension_numbers = #tpu.dot_dimension_numbers<[1], [0], [0], [1], [0, 0, 1, 1], [], []>} : vector<128x8xbf16>, vector<8x128xbf16>, vector<128x128xf32> -> vector<128x128xf32>
    %c0_3 = arith.constant 0 : index
    %c0_4 = arith.constant 0 : index
    %c0_5 = arith.constant 0 : index
    %4 = vector.load %arg4[%c0_3, %c0_4, %c0_5] : memref<5x128x1xf32, #tpu.memory_space<vmem>>, vector<1x128x1xf32>
    %5 = vector.shape_cast %4 : vector<1x128x1xf32> to vector<128x1xf32>
    %6 = vector.broadcast %5 : vector<128x1xf32> to vector<128x128xf32>
    %7 = arith.addf %3, %6 : vector<128x128xf32>
    %cst_6 = arith.constant 0.000000e+00 : f32
    %8 = vector.broadcast %cst_6 : f32 to vector<128x128xf32>
    %9 = arith.cmpf ogt, %7, %8 : vector<128x128xf32>
    %cst_7 = arith.constant 0.00999999977 : f32
    %10 = vector.broadcast %cst_7 : f32 to vector<128x128xf32>
    %11 = arith.mulf %10, %7 : vector<128x128xf32>
    %12 = arith.select %9, %7, %11 : vector<128x128xi1>, vector<128x128xf32>
    %13 = arith.truncf %12 : vector<128x128xf32> to vector<128x128xbf16>
    %c0_8 = arith.constant 0 : index
    %c0_9 = arith.constant 0 : index
    %c0_10 = arith.constant 0 : index
    %14 = vector.load %arg3[%c0_8, %c0_9, %c0_10] : memref<4x128x128xbf16, #tpu.memory_space<vmem>>, vector<1x128x128xbf16>
    %15 = vector.shape_cast %14 : vector<1x128x128xbf16> to vector<128x128xbf16>
    %cst_11 = arith.constant dense<0.000000e+00> : vector<128x128xf32>
    %16 = tpu.matmul %15, %13, %cst_11 {dimension_numbers = #tpu.dot_dimension_numbers<[1], [0], [0], [1], [0, 0, 1, 1], [], []>} : vector<128x128xbf16>, vector<128x128xbf16>, vector<128x128xf32> -> vector<128x128xf32>
    %c1 = arith.constant 1 : index
    %c0_12 = arith.constant 0 : index
    %c0_13 = arith.constant 0 : index
    %17 = vector.load %arg4[%c1, %c0_12, %c0_13] : memref<5x128x1xf32, #tpu.memory_space<vmem>>, vector<1x128x1xf32>
    %18 = vector.shape_cast %17 : vector<1x128x1xf32> to vector<128x1xf32>
    %19 = vector.broadcast %18 : vector<128x1xf32> to vector<128x128xf32>
    %20 = arith.addf %16, %19 : vector<128x128xf32>
    %cst_14 = arith.constant 0.000000e+00 : f32
    %21 = vector.broadcast %cst_14 : f32 to vector<128x128xf32>
    %22 = arith.cmpf ogt, %20, %21 : vector<128x128xf32>
    %cst_15 = arith.constant 0.00999999977 : f32
    %23 = vector.broadcast %cst_15 : f32 to vector<128x128xf32>
    %24 = arith.mulf %23, %20 : vector<128x128xf32>
    %25 = arith.select %22, %20, %24 : vector<128x128xi1>, vector<128x128xf32>
    %26 = arith.truncf %25 : vector<128x128xf32> to vector<128x128xbf16>
    %c1_16 = arith.constant 1 : index
    %c0_17 = arith.constant 0 : index
    %c0_18 = arith.constant 0 : index
    %27 = vector.load %arg3[%c1_16, %c0_17, %c0_18] : memref<4x128x128xbf16, #tpu.memory_space<vmem>>, vector<1x128x128xbf16>
    %28 = vector.shape_cast %27 : vector<1x128x128xbf16> to vector<128x128xbf16>
    %cst_19 = arith.constant dense<0.000000e+00> : vector<128x128xf32>
    %29 = tpu.matmul %28, %26, %cst_19 {dimension_numbers = #tpu.dot_dimension_numbers<[1], [0], [0], [1], [0, 0, 1, 1], [], []>} : vector<128x128xbf16>, vector<128x128xbf16>, vector<128x128xf32> -> vector<128x128xf32>
    %c2 = arith.constant 2 : index
    %c0_20 = arith.constant 0 : index
    %c0_21 = arith.constant 0 : index
    %30 = vector.load %arg4[%c2, %c0_20, %c0_21] : memref<5x128x1xf32, #tpu.memory_space<vmem>>, vector<1x128x1xf32>
    %31 = vector.shape_cast %30 : vector<1x128x1xf32> to vector<128x1xf32>
    %32 = vector.broadcast %31 : vector<128x1xf32> to vector<128x128xf32>
    %33 = arith.addf %29, %32 : vector<128x128xf32>
    %cst_22 = arith.constant 0.000000e+00 : f32
    %34 = vector.broadcast %cst_22 : f32 to vector<128x128xf32>
    %35 = arith.cmpf ogt, %33, %34 : vector<128x128xf32>
    %cst_23 = arith.constant 0.00999999977 : f32
    %36 = vector.broadcast %cst_23 : f32 to vector<128x128xf32>
    %37 = arith.mulf %36, %33 : vector<128x128xf32>
    %38 = arith.select %35, %33, %37 : vector<128x128xi1>, vector<128x128xf32>
    %39 = arith.truncf %38 : vector<128x128xf32> to vector<128x128xbf16>
    %c2_24 = arith.constant 2 : index
    %c0_25 = arith.constant 0 : index
    %c0_26 = arith.constant 0 : index
    %40 = vector.load %arg3[%c2_24, %c0_25, %c0_26] : memref<4x128x128xbf16, #tpu.memory_space<vmem>>, vector<1x128x128xbf16>
    %41 = vector.shape_cast %40 : vector<1x128x128xbf16> to vector<128x128xbf16>
    %cst_27 = arith.constant dense<0.000000e+00> : vector<128x128xf32>
    %42 = tpu.matmul %41, %39, %cst_27 {dimension_numbers = #tpu.dot_dimension_numbers<[1], [0], [0], [1], [0, 0, 1, 1], [], []>} : vector<128x128xbf16>, vector<128x128xbf16>, vector<128x128xf32> -> vector<128x128xf32>
    %c3 = arith.constant 3 : index
    %c0_28 = arith.constant 0 : index
    %c0_29 = arith.constant 0 : index
    %43 = vector.load %arg4[%c3, %c0_28, %c0_29] : memref<5x128x1xf32, #tpu.memory_space<vmem>>, vector<1x128x1xf32>
    %44 = vector.shape_cast %43 : vector<1x128x1xf32> to vector<128x1xf32>
    %45 = vector.broadcast %44 : vector<128x1xf32> to vector<128x128xf32>
    %46 = arith.addf %42, %45 : vector<128x128xf32>
    %cst_30 = arith.constant 0.000000e+00 : f32
    %47 = vector.broadcast %cst_30 : f32 to vector<128x128xf32>
    %48 = arith.cmpf ogt, %46, %47 : vector<128x128xf32>
    %cst_31 = arith.constant 0.00999999977 : f32
    %49 = vector.broadcast %cst_31 : f32 to vector<128x128xf32>
    %50 = arith.mulf %49, %46 : vector<128x128xf32>
    %51 = arith.select %48, %46, %50 : vector<128x128xi1>, vector<128x128xf32>
    %52 = arith.truncf %51 : vector<128x128xf32> to vector<128x128xbf16>
    %c3_32 = arith.constant 3 : index
    %c0_33 = arith.constant 0 : index
    %c0_34 = arith.constant 0 : index
    %53 = vector.load %arg3[%c3_32, %c0_33, %c0_34] : memref<4x128x128xbf16, #tpu.memory_space<vmem>>, vector<1x128x128xbf16>
    %54 = vector.shape_cast %53 : vector<1x128x128xbf16> to vector<128x128xbf16>
    %cst_35 = arith.constant dense<0.000000e+00> : vector<128x128xf32>
    %55 = tpu.matmul %54, %52, %cst_35 {dimension_numbers = #tpu.dot_dimension_numbers<[1], [0], [0], [1], [0, 0, 1, 1], [], []>} : vector<128x128xbf16>, vector<128x128xbf16>, vector<128x128xf32> -> vector<128x128xf32>
    %c4 = arith.constant 4 : index
    %c0_36 = arith.constant 0 : index
    %c0_37 = arith.constant 0 : index
    %56 = vector.load %arg4[%c4, %c0_36, %c0_37] : memref<5x128x1xf32, #tpu.memory_space<vmem>>, vector<1x128x1xf32>
    %57 = vector.shape_cast %56 : vector<1x128x1xf32> to vector<128x1xf32>
    %58 = vector.broadcast %57 : vector<128x1xf32> to vector<128x128xf32>
    %59 = arith.addf %55, %58 : vector<128x128xf32>
    %cst_38 = arith.constant 0.000000e+00 : f32
    %60 = vector.broadcast %cst_38 : f32 to vector<128x128xf32>
    %61 = arith.cmpf ogt, %59, %60 : vector<128x128xf32>
    %cst_39 = arith.constant 0.00999999977 : f32
    %62 = vector.broadcast %cst_39 : f32 to vector<128x128xf32>
    %63 = arith.mulf %62, %59 : vector<128x128xf32>
    %64 = arith.select %61, %59, %63 : vector<128x128xi1>, vector<128x128xf32>
    %65 = arith.truncf %64 : vector<128x128xf32> to vector<128x128xbf16>
    %c0_40 = arith.constant 0 : index
    %c0_41 = arith.constant 0 : index
    %66 = vector.load %arg5[%c0_40, %c0_41] : memref<8x128xbf16, #tpu.memory_space<vmem>>, vector<8x128xbf16>
    %cst_42 = arith.constant dense<0.000000e+00> : vector<8x128xf32>
    %67 = tpu.matmul %66, %65, %cst_42 {dimension_numbers = #tpu.dot_dimension_numbers<[1], [0], [0], [1], [0, 0, 1, 1], [], []>} : vector<8x128xbf16>, vector<128x128xbf16>, vector<8x128xf32> -> vector<8x128xf32>
    %c0_43 = arith.constant 0 : index
    %c0_44 = arith.constant 0 : index
    %68 = vector.load %arg6[%c0_43, %c0_44] : memref<8x8xf32, #tpu.memory_space<vmem>>, vector<8x1xf32>
    %69 = vector.broadcast %68 : vector<8x1xf32> to vector<8x128xf32>
    %70 = arith.addf %67, %69 : vector<8x128xf32>
    %71 = vector.extract_strided_slice %70 {offsets = [0, 0], sizes = [1, 128], strides = [1, 1]} : vector<8x128xf32> to vector<1x128xf32>
    %72 = vector.extract_strided_slice %70 {offsets = [1, 0], sizes = [1, 128], strides = [1, 1]} : vector<8x128xf32> to vector<1x128xf32>
    %73 = arith.subf %71, %72 : vector<1x128xf32>
    %74 = arith.negf %73 : vector<1x128xf32>
    %75 = math.exp %74 : vector<1x128xf32>
    %cst_45 = arith.constant 1.000000e+00 : f32
    %76 = vector.broadcast %cst_45 : f32 to vector<1x128xf32>
    %77 = arith.addf %76, %75 : vector<1x128xf32>
    %78 = arith.divf %76, %77 : vector<1x128xf32>
    %cst_46 = arith.constant 1.000000e+00 : f32
    %79 = vector.broadcast %cst_46 : f32 to vector<1x128xf32>
    %80 = arith.subf %79, %78 : vector<1x128xf32>
    %c0_47 = arith.constant 0 : index
    %c1_48 = arith.constant 1 : index
    %81 = vector.load %arg6[%c0_47, %c1_48] : memref<8x8xf32, #tpu.memory_space<vmem>>, vector<8x1xf32>
    %82 = vector.broadcast %81 : vector<8x1xf32> to vector<8x128xf32>
    %83 = arith.addf %70, %82 : vector<8x128xf32>
    %c0_49 = arith.constant 0 : index
    %c2_50 = arith.constant 2 : index
    %84 = vector.load %arg6[%c0_49, %c2_50] : memref<8x8xf32, #tpu.memory_space<vmem>>, vector<8x1xf32>
    %85 = vector.broadcast %78 : vector<1x128xf32> to vector<8x128xf32>
    %86 = vector.broadcast %84 : vector<8x1xf32> to vector<8x128xf32>
    %87 = arith.mulf %85, %86 : vector<8x128xf32>
    %88 = arith.addf %83, %87 : vector<8x128xf32>
    %89 = vector.extract_strided_slice %88 {offsets = [4, 0], sizes = [1, 128], strides = [1, 1]} : vector<8x128xf32> to vector<1x128xf32>
    %90 = arith.negf %89 : vector<1x128xf32>
    %91 = math.exp %90 : vector<1x128xf32>
    %cst_51 = arith.constant 1.000000e+00 : f32
    %92 = vector.broadcast %cst_51 : f32 to vector<1x128xf32>
    %93 = arith.addf %92, %91 : vector<1x128xf32>
    %94 = arith.divf %92, %93 : vector<1x128xf32>
    %95 = tpu.iota {dimensions = array<i32: 0>} : vector<8x128xi32>
    %c0_i32 = arith.constant 0 : i32
    %96 = vector.broadcast %c0_i32 : i32 to vector<8x128xi32>
    %97 = arith.cmpi eq, %95, %96 : vector<8x128xi32>
    %c1_i32 = arith.constant 1 : i32
    %98 = vector.broadcast %c1_i32 : i32 to vector<8x128xi32>
    %99 = arith.cmpi eq, %95, %98 : vector<8x128xi32>
    %c4_i32 = arith.constant 4 : i32
    %100 = vector.broadcast %c4_i32 : i32 to vector<8x128xi32>
    %101 = arith.cmpi eq, %95, %100 : vector<8x128xi32>
    %102 = vector.shape_cast %94 : vector<1x128xf32> to vector<1x128xf32>
    %103 = vector.broadcast %102 : vector<1x128xf32> to vector<8x128xf32>
    %104 = arith.select %101, %103, %88 : vector<8x128xi1>, vector<8x128xf32>
    %105 = vector.shape_cast %80 : vector<1x128xf32> to vector<1x128xf32>
    %106 = vector.broadcast %105 : vector<1x128xf32> to vector<8x128xf32>
    %107 = arith.select %99, %106, %104 : vector<8x128xi1>, vector<8x128xf32>
    %108 = vector.shape_cast %78 : vector<1x128xf32> to vector<1x128xf32>
    %109 = vector.broadcast %108 : vector<1x128xf32> to vector<8x128xf32>
    %110 = arith.select %97, %109, %107 : vector<8x128xi1>, vector<8x128xf32>
    %c0_52 = arith.constant 0 : index
    %c0_53 = arith.constant 0 : index
    %111 = vector.load %arg7[%c0_52, %c0_53] : memref<8x128xf32, #tpu.memory_space<vmem>>, vector<8x128xf32>
    tpu.vector_store %arg7[%c0_52, %c0_53], %110 {strides = array<i32>} : memref<8x128xf32, #tpu.memory_space<vmem>>, vector<8x128xf32>,
    return
  }
  func.func @transform_0(%arg0: i32) -> (i32, i32) {
    %c0_i32 = arith.constant 0 : i32
    %c0_i32_0 = arith.constant 0 : i32
    return %c0_i32, %arg0 : i32, i32
  }
  func.func @transform_1(%arg0: i32) -> (i32, i32) {
    %c0_i32 = arith.constant 0 : i32
    %c0_i32_0 = arith.constant 0 : i32
    %c0_i32_1 = arith.constant 0 : i32
    return %c0_i32, %c0_i32_0 : i32, i32
  }
  func.func @transform_2(%arg0: i32) -> (i32, i32, i32) {
    %c0_i32 = arith.constant 0 : i32
    %c0_i32_0 = arith.constant 0 : i32
    %c0_i32_1 = arith.constant 0 : i32
    %c0_i32_2 = arith.constant 0 : i32
    return %c0_i32, %c0_i32_0, %c0_i32_1 : i32, i32, i32
  }
  func.func @transform_3(%arg0: i32) -> (i32, i32, i32) {
    %c0_i32 = arith.constant 0 : i32
    %c0_i32_0 = arith.constant 0 : i32
    %c0_i32_1 = arith.constant 0 : i32
    %c0_i32_2 = arith.constant 0 : i32
    return %c0_i32, %c0_i32_0, %c0_i32_1 : i32, i32, i32
  }
  func.func @transform_4(%arg0: i32) -> (i32, i32) {
    %c0_i32 = arith.constant 0 : i32
    %c0_i32_0 = arith.constant 0 : i32
    %c0_i32_1 = arith.constant 0 : i32
    return %c0_i32, %c0_i32_0 : i32, i32
  }
  func.func @transform_5(%arg0: i32) -> (i32, i32) {
    %c0_i32 = arith.constant 0 : i32
    %c0_i32_0 = arith.constant 0 : i32
    %c0_i32_1 = arith.constant 0 : i32
    return %c0_i32, %c0_i32_0 : i32, i32
  }
  func.func @transform_6(%arg0: i32) -> (i32, i32) {
    %c0_i32 = arith.constant 0 : i32
    %c0_i32_0 = arith.constant 0 : i32
    return %c0_i32, %arg0 : i32, i32
  }
}

</mosaic_0001>

<llo_original>
// kernel: tpu_custom_call.1
$region0: #{tpu_custom_call.1}
  #allocation0 [shape = 'u32[]', space=smem, size = 0x4, offset = 0x4, fixed_abs, tag = 'smem constant byte address 0x4 - core index']
  #allocation1 [shape = 'u32[72,128]{1,0:T(1,128)}', space=vmem, size = 0x9000, scoped, tag = 'internal scratch']
  %s0 = inlined_call_operand.vmem [shape: f32[8,128], index: 0, kind: input, shape index: {}]
  %s1 = inlined_call_operand.vmem [shape: bf16[128,8], index: 1, kind: input, shape index: {}]
  %s2 = inlined_call_operand.vmem [shape: bf16[4,128,128], index: 2, kind: input, shape index: {}]
  %s3 = inlined_call_operand.vmem [shape: f32[5,128,1], index: 3, kind: input, shape index: {}]
  %s4 = inlined_call_operand.vmem [shape: bf16[8,128], index: 4, kind: input, shape index: {}]
  %s5 = inlined_call_operand.vmem [shape: f32[8,8], index: 5, kind: input, shape index: {}]
  %s6 = inlined_call_operand.hbm [shape: f32[8,128], index: 6, kind: output, shape index: {}]
  %s7 = sld [smem:[#allocation0]]
  $region34: #{tpu_custom_call.1} parent=0
    _
  %s9 = ssub.s32 1, %s7
  %s10 = scalar_select 0, %s9, %s7
  $region1: #{tpu_custom_call.1} parent=0
    #allocation2 [shape = 'u8[4096]{0}', space=vmem, size = 0x1000, scoped, tag = 'output window, operand 0, single buffered']
    #allocation3 [shape = 's32[1]{0}', space=sflag, size = 0x4, scoped, tag = 'scoped memory for tpu_custom_call.1']
    %11 = vsyncpa [#allocation3], 0
    // Predicated region
    $region2: #{tpu_custom_call.1} parent=1 // pred_check
      _
    $region3: #{tpu_custom_call.1} parent=1 // pred_check_branch
      %13 = sbr.rel (0) target = $region5
    $region4: #{tpu_custom_call.1} parent=1 // pred_region
      _
    $region5: #{tpu_custom_call.1} parent=1 // pred_fallthru
      _
    // Predicated region
    $region6: #{tpu_custom_call.1} parent=1 // pred_check
      _
    $region7: #{tpu_custom_call.1} parent=1 // pred_check_branch
      %15 = sbr.rel (0) target = $region9
    $region8: #{tpu_custom_call.1} parent=1 // pred_region
      _
    $region9: #{tpu_custom_call.1} parent=1 // pred_fallthru
      _
    // Predicated region
    $region10: #{tpu_custom_call.1} parent=1 // pred_check
      _
    $region11: #{tpu_custom_call.1} parent=1 // pred_check_branch
      %17 = sbr.rel (0) target = $region13
    $region12: #{tpu_custom_call.1} parent=1 // pred_region
      _
    $region13: #{tpu_custom_call.1} parent=1 // pred_fallthru
      _
    // Predicated region
    $region14: #{tpu_custom_call.1} parent=1 // pred_check
      _
    $region15: #{tpu_custom_call.1} parent=1 // pred_check_branch
      %19 = sbr.rel (0) target = $region17
    $region16: #{tpu_custom_call.1} parent=1 // pred_region
      _
    $region17: #{tpu_custom_call.1} parent=1 // pred_fallthru
      _
    // Predicated region
    $region18: #{tpu_custom_call.1} parent=1 // pred_check
      _
    $region19: #{tpu_custom_call.1} parent=1 // pred_check_branch
      %21 = sbr.rel (0) target = $region21
    $region20: #{tpu_custom_call.1} parent=1 // pred_region
      _
    $region21: #{tpu_custom_call.1} parent=1 // pred_fallthru
      _
    // Predicated region
    $region22: #{tpu_custom_call.1} parent=1 // pred_check
      _
    $region23: #{tpu_custom_call.1} parent=1 // pred_check_branch
      %23 = sbr.rel (0) target = $region25
    $region24: #{tpu_custom_call.1} parent=1 // pred_region
      _
    $region25: #{tpu_custom_call.1} parent=1 // pred_fallthru
      _
    %v25 = vld [vmem:[%s0] sm:$0xff]
    %v26 = vpack.c.bf16 %v25, %v25
    %v27 = vld [vmem:[%s1] sm:$0xf]
    %v28 = vld [vmem:[%s1 + $0x4] sm:$0xf]
    %v29 = vld [vmem:[%s1 + $0x8] sm:$0xf]
    %v30 = vld [vmem:[%s1 + $0xc] sm:$0xf]
    %v31 = vld [vmem:[%s1 + $0x10] sm:$0xf]
    %v32 = vld [vmem:[%s1 + $0x14] sm:$0xf]
    %v33 = vld [vmem:[%s1 + $0x18] sm:$0xf]
    %v34 = vld [vmem:[%s1 + $0x1c] sm:$0xf]
    %v35 = vld [vmem:[%s1 + $0x20] sm:$0xf]
    %v36 = vld [vmem:[%s1 + $0x24] sm:$0xf]
    %v37 = vld [vmem:[%s1 + $0x28] sm:$0xf]
    %v38 = vld [vmem:[%s1 + $0x2c] sm:$0xf]
    %v39 = vld [vmem:[%s1 + $0x30] sm:$0xf]
    %v40 = vld [vmem:[%s1 + $0x34] sm:$0xf]
    %v41 = vld [vmem:[%s1 + $0x38] sm:$0xf]
    %v42 = vld [vmem:[%s1 + $0x3c] sm:$0xf]
    %v43 = vld [vmem:[%s3] sm:$0xff]
    %v44 = vld [vmem:[%s3 + $0x8] sm:$0xff]
    %v45 = vld [vmem:[%s3 + $0x10] sm:$0xff]
    %v46 = vld [vmem:[%s3 + $0x18] sm:$0xff]
    %v47 = vld [vmem:[%s3 + $0x20] sm:$0xff]
    %v48 = vld [vmem:[%s3 + $0x28] sm:$0xff]
    %v49 = vld [vmem:[%s3 + $0x30] sm:$0xff]
    %v50 = vld [vmem:[%s3 + $0x38] sm:$0xff]
    %v51 = vld [vmem:[%s3 + $0x40] sm:$0xff]
    %v52 = vld [vmem:[%s3 + $0x48] sm:$0xff]
    %v53 = vld [vmem:[%s3 + $0x50] sm:$0xff]
    %v54 = vld [vmem:[%s3 + $0x58] sm:$0xff]
    %v55 = vld [vmem:[%s3 + $0x60] sm:$0xff]
    %v56 = vld [vmem:[%s3 + $0x68] sm:$0xff]
    %v57 = vld [vmem:[%s3 + $0x70] sm:$0xff]
    %v58 = vld [vmem:[%s3 + $0x78] sm:$0xff]
    %60 = vset.pattern.permute.xlu0 0
    %61 = vperm.xlu0 %60, %v43
    %v62 = vpop.permute.xlu0 %61
    %65 = vset.pattern.permute.xlu0 0
    %66 = vperm.xlu0 %65, %v44
    %v67 = vpop.permute.xlu0 %66
    %70 = vset.pattern.permute.xlu0 0
    %71 = vperm.xlu0 %70, %v45
    %v72 = vpop.permute.xlu0 %71
    %75 = vset.pattern.permute.xlu0 0
    %76 = vperm.xlu0 %75, %v46
    %v77 = vpop.permute.xlu0 %76
    %80 = vset.pattern.permute.xlu0 0
    %81 = vperm.xlu0 %80, %v47
    %v82 = vpop.permute.xlu0 %81
    %85 = vset.pattern.permute.xlu0 0
    %86 = vperm.xlu0 %85, %v48
    %v87 = vpop.permute.xlu0 %86
    %90 = vset.pattern.permute.xlu0 0
    %91 = vperm.xlu0 %90, %v49
    %v92 = vpop.permute.xlu0 %91
    %95 = vset.pattern.permute.xlu0 0
    %96 = vperm.xlu0 %95, %v50
    %v97 = vpop.permute.xlu0 %96
    %100 = vset.pattern.permute.xlu0 0
    %101 = vperm.xlu0 %100, %v51
    %v102 = vpop.permute.xlu0 %101
    %105 = vset.pattern.permute.xlu0 0
    %106 = vperm.xlu0 %105, %v52
    %v107 = vpop.permute.xlu0 %106
    %110 = vset.pattern.permute.xlu0 0
    %111 = vperm.xlu0 %110, %v53
    %v112 = vpop.permute.xlu0 %111
    %115 = vset.pattern.permute.xlu0 0
    %116 = vperm.xlu0 %115, %v54
    %v117 = vpop.permute.xlu0 %116
    %120 = vset.pattern.permute.xlu0 0
    %121 = vperm.xlu0 %120, %v55
    %v122 = vpop.permute.xlu0 %121
    %125 = vset.pattern.permute.xlu0 0
    %126 = vperm.xlu0 %125, %v56
    %v127 = vpop.permute.xlu0 %126
    %130 = vset.pattern.permute.xlu0 0
    %131 = vperm.xlu0 %130, %v57
    %v132 = vpop.permute.xlu0 %131
    %135 = vset.pattern.permute.xlu0 0
    %136 = vperm.xlu0 %135, %v58
    %v137 = vpop.permute.xlu0 %136
    %v155 = vunpack.c.l.b16 %v27
    %v156 = vunpack.c.l.b16 %v28
    %v157 = vunpack.c.l.b16 %v29
    %v158 = vunpack.c.l.b16 %v30
    %v159 = vunpack.c.l.b16 %v31
    %v160 = vunpack.c.l.b16 %v32
    %v161 = vunpack.c.l.b16 %v33
    %v162 = vunpack.c.l.b16 %v34
    %v163 = vunpack.c.l.b16 %v35
    %v164 = vunpack.c.l.b16 %v36
    %v165 = vunpack.c.l.b16 %v37
    %v166 = vunpack.c.l.b16 %v38
    %v167 = vunpack.c.l.b16 %v39
    %v168 = vunpack.c.l.b16 %v40
    %v169 = vunpack.c.l.b16 %v41
    %v170 = vunpack.c.l.b16 %v42
    %v171 = vpack.c.b16 %v156, %v155
    %v172 = vpack.c.b16 %v158, %v157
    %v173 = vpack.c.b16 %v160, %v159
    %v174 = vpack.c.b16 %v162, %v161
    %v175 = vpack.c.b16 %v164, %v163
    %v176 = vpack.c.b16 %v166, %v165
    %v177 = vpack.c.b16 %v168, %v167
    %v178 = vpack.c.b16 %v170, %v169
    %vm179 = vcmask 64512
    %v181 = vsel %vm179, %v171, 0
    %v184 = vsel %vm179, %v172, 0
    %v187 = vsel %vm179, %v173, 0
    %v190 = vsel %vm179, %v174, 0
    %v193 = vsel %vm179, %v175, 0
    %v196 = vsel %vm179, %v176, 0
    %v199 = vsel %vm179, %v177, 0
    %v202 = vsel %vm179, %v178, 0
    %vm204 = vcmask 1043456
    %v206 = vsel %vm204, %v26, 0
    %208 = vmatpush.bf16.msra.mxu0 0
    %209 = vmatpush.bf16.msra.mxu0 0
    %210 = vmatpush.bf16.msra.mxu0 0
    %211 = vmatpush.bf16.msra.mxu0 0
    %212 = vmatpush.bf16.msra.mxu0 0
    %213 = vmatpush.bf16.msra.mxu0 0
    %214 = vmatpush.bf16.msra.mxu0 0
    %215 = vmatpush.bf16.msra.mxu0 %v206
    %216 = vmatmul.bf16.gmra.mxu0 %v181
    %v217 = vpop.f32.mrf.mxu0
    %v218 = vadd.f32 %v62, %v217
    %v219 = vpop.f32.mrf.mxu0
    %v220 = vadd.f32 %v67, %v219
    %221 = vmatmul.bf16.gmra.mxu0 %v184
    %v222 = vpop.f32.mrf.mxu0
    %v223 = vadd.f32 %v72, %v222
    %v224 = vpop.f32.mrf.mxu0
    %v225 = vadd.f32 %v77, %v224
    %226 = vmatmul.bf16.gmra.mxu0 %v187
    %v227 = vpop.f32.mrf.mxu0
    %v228 = vadd.f32 %v82, %v227
    %v229 = vpop.f32.mrf.mxu0
    %v230 = vadd.f32 %v87, %v229
    %231 = vmatmul.bf16.gmra.mxu0 %v190
    %v232 = vpop.f32.mrf.mxu0
    %v233 = vadd.f32 %v92, %v232
    %v234 = vpop.f32.mrf.mxu0
    %v235 = vadd.f32 %v97, %v234
    %236 = vmatmul.bf16.gmra.mxu0 %v193
    %v237 = vpop.f32.mrf.mxu0
    %v238 = vadd.f32 %v102, %v237
    %v239 = vpop.f32.mrf.mxu0
    %v240 = vadd.f32 %v107, %v239
    %241 = vmatmul.bf16.gmra.mxu0 %v196
    %v242 = vpop.f32.mrf.mxu0
    %v243 = vadd.f32 %v112, %v242
    %v244 = vpop.f32.mrf.mxu0
    %v245 = vadd.f32 %v117, %v244
    %246 = vmatmul.bf16.gmra.mxu0 %v199
    %v247 = vpop.f32.mrf.mxu0
    %v248 = vadd.f32 %v122, %v247
    %v249 = vpop.f32.mrf.mxu0
    %v250 = vadd.f32 %v127, %v249
    %251 = vmatmul.bf16.gmra.mxu0 %v202
    %v252 = vpop.f32.mrf.mxu0
    %v253 = vadd.f32 %v132, %v252
    %v254 = vpop.f32.mrf.mxu0
    %v255 = vadd.f32 %v137, %v254
    %256 = vdwg.mxu0
    %vm257 = vcmp.gt.f32.partialorder %v218, 0.0
    %vm258 = vcmp.gt.f32.partialorder %v220, 0.0
    %vm259 = vcmp.gt.f32.partialorder %v223, 0.0
    %vm260 = vcmp.gt.f32.partialorder %v225, 0.0
    %vm261 = vcmp.gt.f32.partialorder %v228, 0.0
    %vm262 = vcmp.gt.f32.partialorder %v230, 0.0
    %vm263 = vcmp.gt.f32.partialorder %v233, 0.0
    %vm264 = vcmp.gt.f32.partialorder %v235, 0.0
    %vm265 = vcmp.gt.f32.partialorder %v238, 0.0
    %vm266 = vcmp.gt.f32.partialorder %v240, 0.0
    %vm267 = vcmp.gt.f32.partialorder %v243, 0.0
    %vm268 = vcmp.gt.f32.partialorder %v245, 0.0
    %vm269 = vcmp.gt.f32.partialorder %v248, 0.0
    %vm270 = vcmp.gt.f32.partialorder %v250, 0.0
    %vm271 = vcmp.gt.f32.partialorder %v253, 0.0
    %vm272 = vcmp.gt.f32.partialorder %v255, 0.0
    %v273 = vmul.f32 %v218, 0.01
    %v274 = vmul.f32 %v220, 0.01
    %v275 = vmul.f32 %v223, 0.01
    %v276 = vmul.f32 %v225, 0.01
    %v277 = vmul.f32 %v228, 0.01
    %v278 = vmul.f32 %v230, 0.01
    %v279 = vmul.f32 %v233, 0.01
    %v280 = vmul.f32 %v235, 0.01
    %v281 = vmul.f32 %v238, 0.01
    %v282 = vmul.f32 %v240, 0.01
    %v283 = vmul.f32 %v243, 0.01
    %v284 = vmul.f32 %v245, 0.01
    %v285 = vmul.f32 %v248, 0.01
    %v286 = vmul.f32 %v250, 0.01
    %v287 = vmul.f32 %v253, 0.01
    %v288 = vmul.f32 %v255, 0.01
    %v289 = vsel %vm257, %v218, %v273
    %v290 = vsel %vm258, %v220, %v274
    %v291 = vsel %vm259, %v223, %v275
    %v292 = vsel %vm260, %v225, %v276
    %v293 = vsel %vm261, %v228, %v277
    %v294 = vsel %vm262, %v230, %v278
    %v295 = vsel %vm263, %v233, %v279
    %v296 = vsel %vm264, %v235, %v280
    %v297 = vsel %vm265, %v238, %v281
    %v298 = vsel %vm266, %v240, %v282
    %v299 = vsel %vm267, %v243, %v283
    %v300 = vsel %vm268, %v245, %v284
    %v301 = vsel %vm269, %v248, %v285
    %v302 = vsel %vm270, %v250, %v286
    %v303 = vsel %vm271, %v253, %v287
    %v304 = vsel %vm272, %v255, %v288
    %v305 = vpack.c.bf16 %v290, %v289
    %v306 = vpack.c.bf16 %v292, %v291
    %v307 = vpack.c.bf16 %v294, %v293
    %v308 = vpack.c.bf16 %v296, %v295
    %v309 = vpack.c.bf16 %v298, %v297
    %v310 = vpack.c.bf16 %v300, %v299
    %v311 = vpack.c.bf16 %v302, %v301
    %v312 = vpack.c.bf16 %v304, %v303
    %v313 = vld [vmem:[%s2] sm:$0xf]
    %v314 = vld [vmem:[%s2 + $0x4] sm:$0xf]
    %v315 = vld [vmem:[%s2 + $0x8] sm:$0xf]
    %v316 = vld [vmem:[%s2 + $0xc] sm:$0xf]
    %v317 = vld [vmem:[%s2 + $0x10] sm:$0xf]
    %v318 = vld [vmem:[%s2 + $0x14] sm:$0xf]
    %v319 = vld [vmem:[%s2 + $0x18] sm:$0xf]
    %v320 = vld [vmem:[%s2 + $0x1c] sm:$0xf]
    %v321 = vld [vmem:[%s2 + $0x20] sm:$0xf]
    %v322 = vld [vmem:[%s2 + $0x24] sm:$0xf]
    %v323 = vld [vmem:[%s2 + $0x28] sm:$0xf]
    %v324 = vld [vmem:[%s2 + $0x2c] sm:$0xf]
    %v325 = vld [vmem:[%s2 + $0x30] sm:$0xf]
    %v326 = vld [vmem:[%s2 + $0x34] sm:$0xf]
    %v327 = vld [vmem:[%s2 + $0x38] sm:$0xf]
    %v328 = vld [vmem:[%s2 + $0x3c] sm:$0xf]
    %s329 = scalar_lea.vmem %s3, 128
    %v330 = vld [vmem:[%s329] sm:$0xff]
    %v331 = vld [vmem:[%s329 + $0x8] sm:$0xff]
    %v332 = vld [vmem:[%s329 + $0x10] sm:$0xff]
    %v333 = vld [vmem:[%s329 + $0x18] sm:$0xff]
    %v334 = vld [vmem:[%s329 + $0x20] sm:$0xff]
    %v335 = vld [vmem:[%s329 + $0x28] sm:$0xff]
    %v336 = vld [vmem:[%s329 + $0x30] sm:$0xff]
    %v337 = vld [vmem:[%s329 + $0x38] sm:$0xff]
    %v338 = vld [vmem:[%s329 + $0x40] sm:$0xff]
    %v339 = vld [vmem:[%s329 + $0x48] sm:$0xff]
    %v340 = vld [vmem:[%s329 + $0x50] sm:$0xff]
    %v341 = vld [vmem:[%s329 + $0x58] sm:$0xff]
    %v342 = vld [vmem:[%s329 + $0x60] sm:$0xff]
    %v343 = vld [vmem:[%s329 + $0x68] sm:$0xff]
    %v344 = vld [vmem:[%s329 + $0x70] sm:$0xff]
    %v345 = vld [vmem:[%s329 + $0x78] sm:$0xff]
    %347 = vset.pattern.permute.xlu0 0
    %348 = vperm.xlu0 %347, %v330
    %v349 = vpop.permute.xlu0 %348
    %352 = vset.pattern.permute.xlu0 0
    %353 = vperm.xlu0 %352, %v331
    %v354 = vpop.permute.xlu0 %353
    %357 = vset.pattern.permute.xlu0 0
    %358 = vperm.xlu0 %357, %v332
    %v359 = vpop.permute.xlu0 %358
    %362 = vset.pattern.permute.xlu0 0
    %363 = vperm.xlu0 %362, %v333
    %v364 = vpop.permute.xlu0 %363
    %367 = vset.pattern.permute.xlu0 0
    %368 = vperm.xlu0 %367, %v334
    %v369 = vpop.permute.xlu0 %368
    %372 = vset.pattern.permute.xlu0 0
    %373 = vperm.xlu0 %372, %v335
    %v374 = vpop.permute.xlu0 %373
    %377 = vset.pattern.permute.xlu0 0
    %378 = vperm.xlu0 %377, %v336
    %v379 = vpop.permute.xlu0 %378
    %382 = vset.pattern.permute.xlu0 0
    %383 = vperm.xlu0 %382, %v337
    %v384 = vpop.permute.xlu0 %383
    %387 = vset.pattern.permute.xlu0 0
    %388 = vperm.xlu0 %387, %v338
    %v389 = vpop.permute.xlu0 %388
    %392 = vset.pattern.permute.xlu0 0
    %393 = vperm.xlu0 %392, %v339
    %v394 = vpop.permute.xlu0 %393
    %397 = vset.pattern.permute.xlu0 0
    %398 = vperm.xlu0 %397, %v340
    %v399 = vpop.permute.xlu0 %398
    %402 = vset.pattern.permute.xlu0 0
    %403 = vperm.xlu0 %402, %v341
    %v404 = vpop.permute.xlu0 %403
    %407 = vset.pattern.permute.xlu0 0
    %408 = vperm.xlu0 %407, %v342
    %v409 = vpop.permute.xlu0 %408
    %412 = vset.pattern.permute.xlu0 0
    %413 = vperm.xlu0 %412, %v343
    %v414 = vpop.permute.xlu0 %413
    %417 = vset.pattern.permute.xlu0 0
    %418 = vperm.xlu0 %417, %v344
    %v419 = vpop.permute.xlu0 %418
    %422 = vset.pattern.permute.xlu0 0
    %423 = vperm.xlu0 %422, %v345
    %v424 = vpop.permute.xlu0 %423
    %v442 = vunpack.c.l.b16 %v313
    %v443 = vunpack.c.l.b16 %v314
    %v444 = vunpack.c.l.b16 %v315
    %v445 = vunpack.c.l.b16 %v316
    %v446 = vunpack.c.l.b16 %v317
    %v447 = vunpack.c.l.b16 %v318
    %v448 = vunpack.c.l.b16 %v319
    %v449 = vunpack.c.l.b16 %v320
    %v450 = vunpack.c.l.b16 %v321
    %v451 = vunpack.c.l.b16 %v322
    %v452 = vunpack.c.l.b16 %v323
    %v453 = vunpack.c.l.b16 %v324
    %v454 = vunpack.c.l.b16 %v325
    %v455 = vunpack.c.l.b16 %v326
    %v456 = vunpack.c.l.b16 %v327
    %v457 = vunpack.c.l.b16 %v328
    %v458 = vpack.c.b16 %v443, %v442
    %v459 = vpack.c.b16 %v445, %v444
    %v460 = vpack.c.b16 %v447, %v446
    %v461 = vpack.c.b16 %v449, %v448
    %v462 = vpack.c.b16 %v451, %v450
    %v463 = vpack.c.b16 %v453, %v452
    %v464 = vpack.c.b16 %v455, %v454
    %v465 = vpack.c.b16 %v457, %v456
    %474 = vmatpush.bf16.msra.mxu0 %v312
    %475 = vmatpush.bf16.msra.mxu0 %v311
    %476 = vmatpush.bf16.msra.mxu0 %v310
    %477 = vmatpush.bf16.msra.mxu0 %v309
    %478 = vmatpush.bf16.msra.mxu0 %v308
    %479 = vmatpush.bf16.msra.mxu0 %v307
    %480 = vmatpush.bf16.msra.mxu0 %v306
    %481 = vmatpush.bf16.msra.mxu0 %v305
    %482 = vmatmul.bf16.gmra.mxu0 %v458
    %v483 = vpop.f32.mrf.mxu0
    %v484 = vadd.f32 %v349, %v483
    %v485 = vpop.f32.mrf.mxu0
    %v486 = vadd.f32 %v354, %v485
    %487 = vmatmul.bf16.gmra.mxu0 %v459
    %v488 = vpop.f32.mrf.mxu0
    %v489 = vadd.f32 %v359, %v488
    %v490 = vpop.f32.mrf.mxu0
    %v491 = vadd.f32 %v364, %v490
    %492 = vmatmul.bf16.gmra.mxu0 %v460
    %v493 = vpop.f32.mrf.mxu0
    %v494 = vadd.f32 %v369, %v493
    %v495 = vpop.f32.mrf.mxu0
    %v496 = vadd.f32 %v374, %v495
    %497 = vmatmul.bf16.gmra.mxu0 %v461
    %v498 = vpop.f32.mrf.mxu0
    %v499 = vadd.f32 %v379, %v498
    %v500 = vpop.f32.mrf.mxu0
    %v501 = vadd.f32 %v384, %v500
    %502 = vmatmul.bf16.gmra.mxu0 %v462
    %v503 = vpop.f32.mrf.mxu0
    %v504 = vadd.f32 %v389, %v503
    %v505 = vpop.f32.mrf.mxu0
    %v506 = vadd.f32 %v394, %v505
    %507 = vmatmul.bf16.gmra.mxu0 %v463
    %v508 = vpop.f32.mrf.mxu0
    %v509 = vadd.f32 %v399, %v508
    %v510 = vpop.f32.mrf.mxu0
    %v511 = vadd.f32 %v404, %v510
    %512 = vmatmul.bf16.gmra.mxu0 %v464
    %v513 = vpop.f32.mrf.mxu0
    %v514 = vadd.f32 %v409, %v513
    %v515 = vpop.f32.mrf.mxu0
    %v516 = vadd.f32 %v414, %v515
    %517 = vmatmul.bf16.gmra.mxu0 %v465
    %v518 = vpop.f32.mrf.mxu0
    %v519 = vadd.f32 %v419, %v518
    %v520 = vpop.f32.mrf.mxu0
    %v521 = vadd.f32 %v424, %v520
    %522 = vdwg.mxu0
    %vm523 = vcmp.gt.f32.partialorder %v484, 0.0
    %vm524 = vcmp.gt.f32.partialorder %v486, 0.0
    %vm525 = vcmp.gt.f32.partialorder %v489, 0.0
    %vm526 = vcmp.gt.f32.partialorder %v491, 0.0
    %vm527 = vcmp.gt.f32.partialorder %v494, 0.0
    %vm528 = vcmp.gt.f32.partialorder %v496, 0.0
    %vm529 = vcmp.gt.f32.partialorder %v499, 0.0
    %vm530 = vcmp.gt.f32.partialorder %v501, 0.0
    %vm531 = vcmp.gt.f32.partialorder %v504, 0.0
    %vm532 = vcmp.gt.f32.partialorder %v506, 0.0
    %vm533 = vcmp.gt.f32.partialorder %v509, 0.0
    %vm534 = vcmp.gt.f32.partialorder %v511, 0.0
    %vm535 = vcmp.gt.f32.partialorder %v514, 0.0
    %vm536 = vcmp.gt.f32.partialorder %v516, 0.0
    %vm537 = vcmp.gt.f32.partialorder %v519, 0.0
    %vm538 = vcmp.gt.f32.partialorder %v521, 0.0
    %v539 = vmul.f32 %v484, 0.01
    %v540 = vmul.f32 %v486, 0.01
    %v541 = vmul.f32 %v489, 0.01
    %v542 = vmul.f32 %v491, 0.01
    %v543 = vmul.f32 %v494, 0.01
    %v544 = vmul.f32 %v496, 0.01
    %v545 = vmul.f32 %v499, 0.01
    %v546 = vmul.f32 %v501, 0.01
    %v547 = vmul.f32 %v504, 0.01
    %v548 = vmul.f32 %v506, 0.01
    %v549 = vmul.f32 %v509, 0.01
    %v550 = vmul.f32 %v511, 0.01
    %v551 = vmul.f32 %v514, 0.01
    %v552 = vmul.f32 %v516, 0.01
    %v553 = vmul.f32 %v519, 0.01
    %v554 = vmul.f32 %v521, 0.01
    %v555 = vsel %vm523, %v484, %v539
    %v556 = vsel %vm524, %v486, %v540
    %v557 = vsel %vm525, %v489, %v541
    %v558 = vsel %vm526, %v491, %v542
    %v559 = vsel %vm527, %v494, %v543
    %v560 = vsel %vm528, %v496, %v544
    %v561 = vsel %vm529, %v499, %v545
    %v562 = vsel %vm530, %v501, %v546
    %v563 = vsel %vm531, %v504, %v547
    %v564 = vsel %vm532, %v506, %v548
    %v565 = vsel %vm533, %v509, %v549
    %v566 = vsel %vm534, %v511, %v550
    %v567 = vsel %vm535, %v514, %v551
    %v568 = vsel %vm536, %v516, %v552
    %v569 = vsel %vm537, %v519, %v553
    %v570 = vsel %vm538, %v521, %v554
    %v571 = vpack.c.bf16 %v556, %v555
    %v572 = vpack.c.bf16 %v558, %v557
    %v573 = vpack.c.bf16 %v560, %v559
    %v574 = vpack.c.bf16 %v562, %v561
    %v575 = vpack.c.bf16 %v564, %v563
    %v576 = vpack.c.bf16 %v566, %v565
    %v577 = vpack.c.bf16 %v568, %v567
    %v578 = vpack.c.bf16 %v570, %v569
    %s579 = scalar_lea.vmem %s2, 64
    %v580 = vld [vmem:[%s579] sm:$0xf]
    %v581 = vld [vmem:[%s579 + $0x4] sm:$0xf]
    %v582 = vld [vmem:[%s579 + $0x8] sm:$0xf]
    %v583 = vld [vmem:[%s579 + $0xc] sm:$0xf]
    %v584 = vld [vmem:[%s579 + $0x10] sm:$0xf]
    %v585 = vld [vmem:[%s579 + $0x14] sm:$0xf]
    %v586 = vld [vmem:[%s579 + $0x18] sm:$0xf]
    %v587 = vld [vmem:[%s579 + $0x1c] sm:$0xf]
    %v588 = vld [vmem:[%s579 + $0x20] sm:$0xf]
    %v589 = vld [vmem:[%s579 + $0x24] sm:$0xf]
    %v590 = vld [vmem:[%s579 + $0x28] sm:$0xf]
    %v591 = vld [vmem:[%s579 + $0x2c] sm:$0xf]
    %v592 = vld [vmem:[%s579 + $0x30] sm:$0xf]
    %v593 = vld [vmem:[%s579 + $0x34] sm:$0xf]
    %v594 = vld [vmem:[%s579 + $0x38] sm:$0xf]
    %v595 = vld [vmem:[%s579 + $0x3c] sm:$0xf]
    %s596 = scalar_lea.vmem %s3, 256
    %v597 = vld [vmem:[%s596] sm:$0xff]
    %v598 = vld [vmem:[%s596 + $0x8] sm:$0xff]
    %v599 = vld [vmem:[%s596 + $0x10] sm:$0xff]
    %v600 = vld [vmem:[%s596 + $0x18] sm:$0xff]
    %v601 = vld [vmem:[%s596 + $0x20] sm:$0xff]
    %v602 = vld [vmem:[%s596 + $0x28] sm:$0xff]
    %v603 = vld [vmem:[%s596 + $0x30] sm:$0xff]
    %v604 = vld [vmem:[%s596 + $0x38] sm:$0xff]
    %v605 = vld [vmem:[%s596 + $0x40] sm:$0xff]
    %v606 = vld [vmem:[%s596 + $0x48] sm:$0xff]
    %v607 = vld [vmem:[%s596 + $0x50] sm:$0xff]
    %v608 = vld [vmem:[%s596 + $0x58] sm:$0xff]
    %v609 = vld [vmem:[%s596 + $0x60] sm:$0xff]
    %v610 = vld [vmem:[%s596 + $0x68] sm:$0xff]
    %v611 = vld [vmem:[%s596 + $0x70] sm:$0xff]
    %v612 = vld [vmem:[%s596 + $0x78] sm:$0xff]
    %614 = vset.pattern.permute.xlu0 0
    %615 = vperm.xlu0 %614, %v597
    %v616 = vpop.permute.xlu0 %615
    %619 = vset.pattern.permute.xlu0 0
    %620 = vperm.xlu0 %619, %v598
    %v621 = vpop.permute.xlu0 %620
    %624 = vset.pattern.permute.xlu0 0
    %625 = vperm.xlu0 %624, %v599
    %v626 = vpop.permute.xlu0 %625
    %629 = vset.pattern.permute.xlu0 0
    %630 = vperm.xlu0 %629, %v600
    %v631 = vpop.permute.xlu0 %630
    %634 = vset.pattern.permute.xlu0 0
    %635 = vperm.xlu0 %634, %v601
    %v636 = vpop.permute.xlu0 %635
    %639 = vset.pattern.permute.xlu0 0
    %640 = vperm.xlu0 %639, %v602
    %v641 = vpop.permute.xlu0 %640
    %644 = vset.pattern.permute.xlu0 0
    %645 = vperm.xlu0 %644, %v603
    %v646 = vpop.permute.xlu0 %645
    %649 = vset.pattern.permute.xlu0 0
    %650 = vperm.xlu0 %649, %v604
    %v651 = vpop.permute.xlu0 %650
    %654 = vset.pattern.permute.xlu0 0
    %655 = vperm.xlu0 %654, %v605
    %v656 = vpop.permute.xlu0 %655
    %659 = vset.pattern.permute.xlu0 0
    %660 = vperm.xlu0 %659, %v606
    %v661 = vpop.permute.xlu0 %660
    %664 = vset.pattern.permute.xlu0 0
    %665 = vperm.xlu0 %664, %v607
    %v666 = vpop.permute.xlu0 %665
    %669 = vset.pattern.permute.xlu0 0
    %670 = vperm.xlu0 %669, %v608
    %v671 = vpop.permute.xlu0 %670
    %674 = vset.pattern.permute.xlu0 0
    %675 = vperm.xlu0 %674, %v609
    %v676 = vpop.permute.xlu0 %675
    %679 = vset.pattern.permute.xlu0 0
    %680 = vperm.xlu0 %679, %v610
    %v681 = vpop.permute.xlu0 %680
    %684 = vset.pattern.permute.xlu0 0
    %685 = vperm.xlu0 %684, %v611
    %v686 = vpop.permute.xlu0 %685
    %689 = vset.pattern.permute.xlu0 0
    %690 = vperm.xlu0 %689, %v612
    %v691 = vpop.permute.xlu0 %690
    %v709 = vunpack.c.l.b16 %v580
    %v710 = vunpack.c.l.b16 %v581
    %v711 = vunpack.c.l.b16 %v582
    %v712 = vunpack.c.l.b16 %v583
    %v713 = vunpack.c.l.b16 %v584
    %v714 = vunpack.c.l.b16 %v585
    %v715 = vunpack.c.l.b16 %v586
    %v716 = vunpack.c.l.b16 %v587
    %v717 = vunpack.c.l.b16 %v588
    %v718 = vunpack.c.l.b16 %v589
    %v719 = vunpack.c.l.b16 %v590
    %v720 = vunpack.c.l.b16 %v591
    %v721 = vunpack.c.l.b16 %v592
    %v722 = vunpack.c.l.b16 %v593
    %v723 = vunpack.c.l.b16 %v594
    %v724 = vunpack.c.l.b16 %v595
    %v725 = vpack.c.b16 %v710, %v709
    %v726 = vpack.c.b16 %v712, %v711
    %v727 = vpack.c.b16 %v714, %v713
    %v728 = vpack.c.b16 %v716, %v715
    %v729 = vpack.c.b16 %v718, %v717
    %v730 = vpack.c.b16 %v720, %v719
    %v731 = vpack.c.b16 %v722, %v721
    %v732 = vpack.c.b16 %v724, %v723
    %741 = vmatpush.bf16.msra.mxu0 %v578
    %742 = vmatpush.bf16.msra.mxu0 %v577
    %743 = vmatpush.bf16.msra.mxu0 %v576
    %744 = vmatpush.bf16.msra.mxu0 %v575
    %745 = vmatpush.bf16.msra.mxu0 %v574
    %746 = vmatpush.bf16.msra.mxu0 %v573
    %747 = vmatpush.bf16.msra.mxu0 %v572
    %748 = vmatpush.bf16.msra.mxu0 %v571
    %749 = vmatmul.bf16.gmra.mxu0 %v725
    %v750 = vpop.f32.mrf.mxu0
    %v751 = vadd.f32 %v616, %v750
    %v752 = vpop.f32.mrf.mxu0
    %v753 = vadd.f32 %v621, %v752
    %754 = vmatmul.bf16.gmra.mxu0 %v726
    %v755 = vpop.f32.mrf.mxu0
    %v756 = vadd.f32 %v626, %v755
    %v757 = vpop.f32.mrf.mxu0
    %v758 = vadd.f32 %v631, %v757
    %759 = vmatmul.bf16.gmra.mxu0 %v727
    %v760 = vpop.f32.mrf.mxu0
    %v761 = vadd.f32 %v636, %v760
    %v762 = vpop.f32.mrf.mxu0
    %v763 = vadd.f32 %v641, %v762
    %764 = vmatmul.bf16.gmra.mxu0 %v728
    %v765 = vpop.f32.mrf.mxu0
    %v766 = vadd.f32 %v646, %v765
    %v767 = vpop.f32.mrf.mxu0
    %v768 = vadd.f32 %v651, %v767
    %769 = vmatmul.bf16.gmra.mxu0 %v729
    %v770 = vpop.f32.mrf.mxu0
    %v771 = vadd.f32 %v656, %v770
    %v772 = vpop.f32.mrf.mxu0
    %v773 = vadd.f32 %v661, %v772
    %774 = vmatmul.bf16.gmra.mxu0 %v730
    %v775 = vpop.f32.mrf.mxu0
    %v776 = vadd.f32 %v666, %v775
    %v777 = vpop.f32.mrf.mxu0
    %v778 = vadd.f32 %v671, %v777
    %779 = vmatmul.bf16.gmra.mxu0 %v731
    %v780 = vpop.f32.mrf.mxu0
    %v781 = vadd.f32 %v676, %v780
    %v782 = vpop.f32.mrf.mxu0
    %v783 = vadd.f32 %v681, %v782
    %784 = vmatmul.bf16.gmra.mxu0 %v732
    %v785 = vpop.f32.mrf.mxu0
    %v786 = vadd.f32 %v686, %v785
    %v787 = vpop.f32.mrf.mxu0
    %v788 = vadd.f32 %v691, %v787
    %789 = vdwg.mxu0
    %vm790 = vcmp.gt.f32.partialorder %v751, 0.0
    %vm791 = vcmp.gt.f32.partialorder %v753, 0.0
    %vm792 = vcmp.gt.f32.partialorder %v756, 0.0
    %vm793 = vcmp.gt.f32.partialorder %v758, 0.0
    %vm794 = vcmp.gt.f32.partialorder %v761, 0.0
    %vm795 = vcmp.gt.f32.partialorder %v763, 0.0
    %vm796 = vcmp.gt.f32.partialorder %v766, 0.0
    %vm797 = vcmp.gt.f32.partialorder %v768, 0.0
    %vm798 = vcmp.gt.f32.partialorder %v771, 0.0
    %vm799 = vcmp.gt.f32.partialorder %v773, 0.0
    %vm800 = vcmp.gt.f32.partialorder %v776, 0.0
    %vm801 = vcmp.gt.f32.partialorder %v778, 0.0
    %vm802 = vcmp.gt.f32.partialorder %v781, 0.0
    %vm803 = vcmp.gt.f32.partialorder %v783, 0.0
    %vm804 = vcmp.gt.f32.partialorder %v786, 0.0
    %vm805 = vcmp.gt.f32.partialorder %v788, 0.0
    %v806 = vmul.f32 %v751, 0.01
    %v807 = vmul.f32 %v753, 0.01
    %v808 = vmul.f32 %v756, 0.01
    %v809 = vmul.f32 %v758, 0.01
    %v810 = vmul.f32 %v761, 0.01
    %v811 = vmul.f32 %v763, 0.01
    %v812 = vmul.f32 %v766, 0.01
    %v813 = vmul.f32 %v768, 0.01
    %v814 = vmul.f32 %v771, 0.01
    %v815 = vmul.f32 %v773, 0.01
    %v816 = vmul.f32 %v776, 0.01
    %v817 = vmul.f32 %v778, 0.01
    %v818 = vmul.f32 %v781, 0.01
    %v819 = vmul.f32 %v783, 0.01
    %v820 = vmul.f32 %v786, 0.01
    %v821 = vmul.f32 %v788, 0.01
    %v822 = vsel %vm790, %v751, %v806
    %v823 = vsel %vm791, %v753, %v807
    %v824 = vsel %vm792, %v756, %v808
    %v825 = vsel %vm793, %v758, %v809
    %v826 = vsel %vm794, %v761, %v810
    %v827 = vsel %vm795, %v763, %v811
    %v828 = vsel %vm796, %v766, %v812
    %v829 = vsel %vm797, %v768, %v813
    %v830 = vsel %vm798, %v771, %v814
    %v831 = vsel %vm799, %v773, %v815
    %v832 = vsel %vm800, %v776, %v816
    %v833 = vsel %vm801, %v778, %v817
    %v834 = vsel %vm802, %v781, %v818
    %v835 = vsel %vm803, %v783, %v819
    %v836 = vsel %vm804, %v786, %v820
    %v837 = vsel %vm805, %v788, %v821
    %v838 = vpack.c.bf16 %v823, %v822
    %v839 = vpack.c.bf16 %v825, %v824
    %v840 = vpack.c.bf16 %v827, %v826
    %v841 = vpack.c.bf16 %v829, %v828
    %v842 = vpack.c.bf16 %v831, %v830
    %v843 = vpack.c.bf16 %v833, %v832
    %v844 = vpack.c.bf16 %v835, %v834
    %v845 = vpack.c.bf16 %v837, %v836
    %s846 = scalar_lea.vmem %s2, 128
    %v847 = vld [vmem:[%s846] sm:$0xf]
    %v848 = vld [vmem:[%s846 + $0x4] sm:$0xf]
    %v849 = vld [vmem:[%s846 + $0x8] sm:$0xf]
    %v850 = vld [vmem:[%s846 + $0xc] sm:$0xf]
    %v851 = vld [vmem:[%s846 + $0x10] sm:$0xf]
    %v852 = vld [vmem:[%s846 + $0x14] sm:$0xf]
    %v853 = vld [vmem:[%s846 + $0x18] sm:$0xf]
    %v854 = vld [vmem:[%s846 + $0x1c] sm:$0xf]
    %v855 = vld [vmem:[%s846 + $0x20] sm:$0xf]
    %v856 = vld [vmem:[%s846 + $0x24] sm:$0xf]
    %v857 = vld [vmem:[%s846 + $0x28] sm:$0xf]
    %v858 = vld [vmem:[%s846 + $0x2c] sm:$0xf]
    %v859 = vld [vmem:[%s846 + $0x30] sm:$0xf]
    %v860 = vld [vmem:[%s846 + $0x34] sm:$0xf]
    %v861 = vld [vmem:[%s846 + $0x38] sm:$0xf]
    %v862 = vld [vmem:[%s846 + $0x3c] sm:$0xf]
    %s863 = scalar_lea.vmem %s3, 384
    %v864 = vld [vmem:[%s863] sm:$0xff]
    %v865 = vld [vmem:[%s863 + $0x8] sm:$0xff]
    %v866 = vld [vmem:[%s863 + $0x10] sm:$0xff]
    %v867 = vld [vmem:[%s863 + $0x18] sm:$0xff]
    %v868 = vld [vmem:[%s863 + $0x20] sm:$0xff]
    %v869 = vld [vmem:[%s863 + $0x28] sm:$0xff]
    %v870 = vld [vmem:[%s863 + $0x30] sm:$0xff]
    %v871 = vld [vmem:[%s863 + $0x38] sm:$0xff]
    %v872 = vld [vmem:[%s863 + $0x40] sm:$0xff]
    %v873 = vld [vmem:[%s863 + $0x48] sm:$0xff]
    %v874 = vld [vmem:[%s863 + $0x50] sm:$0xff]
    %v875 = vld [vmem:[%s863 + $0x58] sm:$0xff]
    %v876 = vld [vmem:[%s863 + $0x60] sm:$0xff]
    %v877 = vld [vmem:[%s863 + $0x68] sm:$0xff]
    %v878 = vld [vmem:[%s863 + $0x70] sm:$0xff]
    %v879 = vld [vmem:[%s863 + $0x78] sm:$0xff]
    %881 = vset.pattern.permute.xlu0 0
    %882 = vperm.xlu0 %881, %v864
    %v883 = vpop.permute.xlu0 %882
    %886 = vset.pattern.permute.xlu0 0
    %887 = vperm.xlu0 %886, %v865
    %v888 = vpop.permute.xlu0 %887
    %891 = vset.pattern.permute.xlu0 0
    %892 = vperm.xlu0 %891, %v866
    %v893 = vpop.permute.xlu0 %892
    %896 = vset.pattern.permute.xlu0 0
    %897 = vperm.xlu0 %896, %v867
    %v898 = vpop.permute.xlu0 %897
    %901 = vset.pattern.permute.xlu0 0
    %902 = vperm.xlu0 %901, %v868
    %v903 = vpop.permute.xlu0 %902
    %906 = vset.pattern.permute.xlu0 0
    %907 = vperm.xlu0 %906, %v869
    %v908 = vpop.permute.xlu0 %907
    %911 = vset.pattern.permute.xlu0 0
    %912 = vperm.xlu0 %911, %v870
    %v913 = vpop.permute.xlu0 %912
    %916 = vset.pattern.permute.xlu0 0
    %917 = vperm.xlu0 %916, %v871
    %v918 = vpop.permute.xlu0 %917
    %921 = vset.pattern.permute.xlu0 0
    %922 = vperm.xlu0 %921, %v872
    %v923 = vpop.permute.xlu0 %922
    %926 = vset.pattern.permute.xlu0 0
    %927 = vperm.xlu0 %926, %v873
    %v928 = vpop.permute.xlu0 %927
    %931 = vset.pattern.permute.xlu0 0
    %932 = vperm.xlu0 %931, %v874
    %v933 = vpop.permute.xlu0 %932
    %936 = vset.pattern.permute.xlu0 0
    %937 = vperm.xlu0 %936, %v875
    %v938 = vpop.permute.xlu0 %937
    %941 = vset.pattern.permute.xlu0 0
    %942 = vperm.xlu0 %941, %v876
    %v943 = vpop.permute.xlu0 %942
    %946 = vset.pattern.permute.xlu0 0
    %947 = vperm.xlu0 %946, %v877
    %v948 = vpop.permute.xlu0 %947
    %951 = vset.pattern.permute.xlu0 0
    %952 = vperm.xlu0 %951, %v878
    %v953 = vpop.permute.xlu0 %952
    %956 = vset.pattern.permute.xlu0 0
    %957 = vperm.xlu0 %956, %v879
    %v958 = vpop.permute.xlu0 %957
    %v976 = vunpack.c.l.b16 %v847
    %v977 = vunpack.c.l.b16 %v848
    %v978 = vunpack.c.l.b16 %v849
    %v979 = vunpack.c.l.b16 %v850
    %v980 = vunpack.c.l.b16 %v851
    %v981 = vunpack.c.l.b16 %v852
    %v982 = vunpack.c.l.b16 %v853
    %v983 = vunpack.c.l.b16 %v854
    %v984 = vunpack.c.l.b16 %v855
    %v985 = vunpack.c.l.b16 %v856
    %v986 = vunpack.c.l.b16 %v857
    %v987 = vunpack.c.l.b16 %v858
    %v988 = vunpack.c.l.b16 %v859
    %v989 = vunpack.c.l.b16 %v860
    %v990 = vunpack.c.l.b16 %v861
    %v991 = vunpack.c.l.b16 %v862
    %v992 = vpack.c.b16 %v977, %v976
    %v993 = vpack.c.b16 %v979, %v978
    %v994 = vpack.c.b16 %v981, %v980
    %v995 = vpack.c.b16 %v983, %v982
    %v996 = vpack.c.b16 %v985, %v984
    %v997 = vpack.c.b16 %v987, %v986
    %v998 = vpack.c.b16 %v989, %v988
    %v999 = vpack.c.b16 %v991, %v990
    %1008 = vmatpush.bf16.msra.mxu0 %v845
    %1009 = vmatpush.bf16.msra.mxu0 %v844
    %1010 = vmatpush.bf16.msra.mxu0 %v843
    %1011 = vmatpush.bf16.msra.mxu0 %v842
    %1012 = vmatpush.bf16.msra.mxu0 %v841
    %1013 = vmatpush.bf16.msra.mxu0 %v840
    %1014 = vmatpush.bf16.msra.mxu0 %v839
    %1015 = vmatpush.bf16.msra.mxu0 %v838
    %1016 = vmatmul.bf16.gmra.mxu0 %v992
    %v1017 = vpop.f32.mrf.mxu0
    %v1018 = vadd.f32 %v883, %v1017
    %v1019 = vpop.f32.mrf.mxu0
    %v1020 = vadd.f32 %v888, %v1019
    %1021 = vmatmul.bf16.gmra.mxu0 %v993
    %v1022 = vpop.f32.mrf.mxu0
    %v1023 = vadd.f32 %v893, %v1022
    %v1024 = vpop.f32.mrf.mxu0
    %v1025 = vadd.f32 %v898, %v1024
    %1026 = vmatmul.bf16.gmra.mxu0 %v994
    %v1027 = vpop.f32.mrf.mxu0
    %v1028 = vadd.f32 %v903, %v1027
    %v1029 = vpop.f32.mrf.mxu0
    %v1030 = vadd.f32 %v908, %v1029
    %1031 = vmatmul.bf16.gmra.mxu0 %v995
    %v1032 = vpop.f32.mrf.mxu0
    %v1033 = vadd.f32 %v913, %v1032
    %v1034 = vpop.f32.mrf.mxu0
    %v1035 = vadd.f32 %v918, %v1034
    %1036 = vmatmul.bf16.gmra.mxu0 %v996
    %v1037 = vpop.f32.mrf.mxu0
    %v1038 = vadd.f32 %v923, %v1037
    %v1039 = vpop.f32.mrf.mxu0
    %v1040 = vadd.f32 %v928, %v1039
    %1041 = vmatmul.bf16.gmra.mxu0 %v997
    %v1042 = vpop.f32.mrf.mxu0
    %v1043 = vadd.f32 %v933, %v1042
    %v1044 = vpop.f32.mrf.mxu0
    %v1045 = vadd.f32 %v938, %v1044
    %1046 = vmatmul.bf16.gmra.mxu0 %v998
    %v1047 = vpop.f32.mrf.mxu0
    %v1048 = vadd.f32 %v943, %v1047
    %v1049 = vpop.f32.mrf.mxu0
    %v1050 = vadd.f32 %v948, %v1049
    %1051 = vmatmul.bf16.gmra.mxu0 %v999
    %v1052 = vpop.f32.mrf.mxu0
    %v1053 = vadd.f32 %v953, %v1052
    %v1054 = vpop.f32.mrf.mxu0
    %v1055 = vadd.f32 %v958, %v1054
    %1056 = vdwg.mxu0
    %vm1057 = vcmp.gt.f32.partialorder %v1018, 0.0
    %vm1058 = vcmp.gt.f32.partialorder %v1020, 0.0
    %vm1059 = vcmp.gt.f32.partialorder %v1023, 0.0
    %vm1060 = vcmp.gt.f32.partialorder %v1025, 0.0
    %vm1061 = vcmp.gt.f32.partialorder %v1028, 0.0
    %vm1062 = vcmp.gt.f32.partialorder %v1030, 0.0
    %vm1063 = vcmp.gt.f32.partialorder %v1033, 0.0
    %vm1064 = vcmp.gt.f32.partialorder %v1035, 0.0
    %vm1065 = vcmp.gt.f32.partialorder %v1038, 0.0
    %vm1066 = vcmp.gt.f32.partialorder %v1040, 0.0
    %vm1067 = vcmp.gt.f32.partialorder %v1043, 0.0
    %vm1068 = vcmp.gt.f32.partialorder %v1045, 0.0
    %vm1069 = vcmp.gt.f32.partialorder %v1048, 0.0
    %vm1070 = vcmp.gt.f32.partialorder %v1050, 0.0
    %vm1071 = vcmp.gt.f32.partialorder %v1053, 0.0
    %vm1072 = vcmp.gt.f32.partialorder %v1055, 0.0
    %v1073 = vmul.f32 %v1018, 0.01
    %v1074 = vmul.f32 %v1020, 0.01
    %v1075 = vmul.f32 %v1023, 0.01
    %v1076 = vmul.f32 %v1025, 0.01
    %v1077 = vmul.f32 %v1028, 0.01
    %v1078 = vmul.f32 %v1030, 0.01
    %v1079 = vmul.f32 %v1033, 0.01
    %v1080 = vmul.f32 %v1035, 0.01
    %v1081 = vmul.f32 %v1038, 0.01
    %v1082 = vmul.f32 %v1040, 0.01
    %v1083 = vmul.f32 %v1043, 0.01
    %v1084 = vmul.f32 %v1045, 0.01
    %v1085 = vmul.f32 %v1048, 0.01
    %v1086 = vmul.f32 %v1050, 0.01
    %v1087 = vmul.f32 %v1053, 0.01
    %v1088 = vmul.f32 %v1055, 0.01
    %v1089 = vsel %vm1057, %v1018, %v1073
    %v1090 = vsel %vm1058, %v1020, %v1074
    %v1091 = vsel %vm1059, %v1023, %v1075
    %v1092 = vsel %vm1060, %v1025, %v1076
    %v1093 = vsel %vm1061, %v1028, %v1077
    %v1094 = vsel %vm1062, %v1030, %v1078
    %v1095 = vsel %vm1063, %v1033, %v1079
    %v1096 = vsel %vm1064, %v1035, %v1080
    %v1097 = vsel %vm1065, %v1038, %v1081
    %v1098 = vsel %vm1066, %v1040, %v1082
    %v1099 = vsel %vm1067, %v1043, %v1083
    %v1100 = vsel %vm1068, %v1045, %v1084
    %v1101 = vsel %vm1069, %v1048, %v1085
    %v1102 = vsel %vm1070, %v1050, %v1086
    %v1103 = vsel %vm1071, %v1053, %v1087
    %v1104 = vsel %vm1072, %v1055, %v1088
    %v1105 = vpack.c.bf16 %v1090, %v1089
    %v1106 = vpack.c.bf16 %v1092, %v1091
    %v1107 = vpack.c.bf16 %v1094, %v1093
    %v1108 = vpack.c.bf16 %v1096, %v1095
    %v1109 = vpack.c.bf16 %v1098, %v1097
    %v1110 = vpack.c.bf16 %v1100, %v1099
    %v1111 = vpack.c.bf16 %v1102, %v1101
    %v1112 = vpack.c.bf16 %v1104, %v1103
    %s1113 = scalar_lea.vmem %s2, 192
    %v1114 = vld [vmem:[%s1113] sm:$0xf]
    %v1115 = vld [vmem:[%s1113 + $0x4] sm:$0xf]
    %v1116 = vld [vmem:[%s1113 + $0x8] sm:$0xf]
    %v1117 = vld [vmem:[%s1113 + $0xc] sm:$0xf]
    %v1118 = vld [vmem:[%s1113 + $0x10] sm:$0xf]
    %v1119 = vld [vmem:[%s1113 + $0x14] sm:$0xf]
    %v1120 = vld [vmem:[%s1113 + $0x18] sm:$0xf]
    %v1121 = vld [vmem:[%s1113 + $0x1c] sm:$0xf]
    %v1122 = vld [vmem:[%s1113 + $0x20] sm:$0xf]
    %v1123 = vld [vmem:[%s1113 + $0x24] sm:$0xf]
    %v1124 = vld [vmem:[%s1113 + $0x28] sm:$0xf]
    %v1125 = vld [vmem:[%s1113 + $0x2c] sm:$0xf]
    %v1126 = vld [vmem:[%s1113 + $0x30] sm:$0xf]
    %v1127 = vld [vmem:[%s1113 + $0x34] sm:$0xf]
    %v1128 = vld [vmem:[%s1113 + $0x38] sm:$0xf]
    %v1129 = vld [vmem:[%s1113 + $0x3c] sm:$0xf]
    %s1130 = scalar_lea.vmem %s3, 512
    %v1131 = vld [vmem:[%s1130] sm:$0xff]
    %v1132 = vld [vmem:[%s1130 + $0x8] sm:$0xff]
    %v1133 = vld [vmem:[%s1130 + $0x10] sm:$0xff]
    %v1134 = vld [vmem:[%s1130 + $0x18] sm:$0xff]
    %v1135 = vld [vmem:[%s1130 + $0x20] sm:$0xff]
    %v1136 = vld [vmem:[%s1130 + $0x28] sm:$0xff]
    %v1137 = vld [vmem:[%s1130 + $0x30] sm:$0xff]
    %v1138 = vld [vmem:[%s1130 + $0x38] sm:$0xff]
    %v1139 = vld [vmem:[%s1130 + $0x40] sm:$0xff]
    %v1140 = vld [vmem:[%s1130 + $0x48] sm:$0xff]
    %v1141 = vld [vmem:[%s1130 + $0x50] sm:$0xff]
    %v1142 = vld [vmem:[%s1130 + $0x58] sm:$0xff]
    %v1143 = vld [vmem:[%s1130 + $0x60] sm:$0xff]
    %v1144 = vld [vmem:[%s1130 + $0x68] sm:$0xff]
    %v1145 = vld [vmem:[%s1130 + $0x70] sm:$0xff]
    %v1146 = vld [vmem:[%s1130 + $0x78] sm:$0xff]
    %1148 = vset.pattern.permute.xlu0 0
    %1149 = vperm.xlu0 %1148, %v1131
    %v1150 = vpop.permute.xlu0 %1149
    %1153 = vset.pattern.permute.xlu0 0
    %1154 = vperm.xlu0 %1153, %v1132
    %v1155 = vpop.permute.xlu0 %1154
    %1158 = vset.pattern.permute.xlu0 0
    %1159 = vperm.xlu0 %1158, %v1133
    %v1160 = vpop.permute.xlu0 %1159
    %1163 = vset.pattern.permute.xlu0 0
    %1164 = vperm.xlu0 %1163, %v1134
    %v1165 = vpop.permute.xlu0 %1164
    %1168 = vset.pattern.permute.xlu0 0
    %1169 = vperm.xlu0 %1168, %v1135
    %v1170 = vpop.permute.xlu0 %1169
    %1173 = vset.pattern.permute.xlu0 0
    %1174 = vperm.xlu0 %1173, %v1136
    %v1175 = vpop.permute.xlu0 %1174
    %1178 = vset.pattern.permute.xlu0 0
    %1179 = vperm.xlu0 %1178, %v1137
    %v1180 = vpop.permute.xlu0 %1179
    %1183 = vset.pattern.permute.xlu0 0
    %1184 = vperm.xlu0 %1183, %v1138
    %v1185 = vpop.permute.xlu0 %1184
    %1188 = vset.pattern.permute.xlu0 0
    %1189 = vperm.xlu0 %1188, %v1139
    %v1190 = vpop.permute.xlu0 %1189
    %1193 = vset.pattern.permute.xlu0 0
    %1194 = vperm.xlu0 %1193, %v1140
    %v1195 = vpop.permute.xlu0 %1194
    %1198 = vset.pattern.permute.xlu0 0
    %1199 = vperm.xlu0 %1198, %v1141
    %v1200 = vpop.permute.xlu0 %1199
    %1203 = vset.pattern.permute.xlu0 0
    %1204 = vperm.xlu0 %1203, %v1142
    %v1205 = vpop.permute.xlu0 %1204
    %1208 = vset.pattern.permute.xlu0 0
    %1209 = vperm.xlu0 %1208, %v1143
    %v1210 = vpop.permute.xlu0 %1209
    %1213 = vset.pattern.permute.xlu0 0
    %1214 = vperm.xlu0 %1213, %v1144
    %v1215 = vpop.permute.xlu0 %1214
    %1218 = vset.pattern.permute.xlu0 0
    %1219 = vperm.xlu0 %1218, %v1145
    %v1220 = vpop.permute.xlu0 %1219
    %1223 = vset.pattern.permute.xlu0 0
    %1224 = vperm.xlu0 %1223, %v1146
    %v1225 = vpop.permute.xlu0 %1224
    %v1243 = vunpack.c.l.b16 %v1114
    %v1244 = vunpack.c.l.b16 %v1115
    %v1245 = vunpack.c.l.b16 %v1116
    %v1246 = vunpack.c.l.b16 %v1117
    %v1247 = vunpack.c.l.b16 %v1118
    %v1248 = vunpack.c.l.b16 %v1119
    %v1249 = vunpack.c.l.b16 %v1120
    %v1250 = vunpack.c.l.b16 %v1121
    %v1251 = vunpack.c.l.b16 %v1122
    %v1252 = vunpack.c.l.b16 %v1123
    %v1253 = vunpack.c.l.b16 %v1124
    %v1254 = vunpack.c.l.b16 %v1125
    %v1255 = vunpack.c.l.b16 %v1126
    %v1256 = vunpack.c.l.b16 %v1127
    %v1257 = vunpack.c.l.b16 %v1128
    %v1258 = vunpack.c.l.b16 %v1129
    %v1259 = vpack.c.b16 %v1244, %v1243
    %v1260 = vpack.c.b16 %v1246, %v1245
    %v1261 = vpack.c.b16 %v1248, %v1247
    %v1262 = vpack.c.b16 %v1250, %v1249
    %v1263 = vpack.c.b16 %v1252, %v1251
    %v1264 = vpack.c.b16 %v1254, %v1253
    %v1265 = vpack.c.b16 %v1256, %v1255
    %v1266 = vpack.c.b16 %v1258, %v1257
    %1275 = vmatpush.bf16.msra.mxu0 %v1112
    %1276 = vmatpush.bf16.msra.mxu0 %v1111
    %1277 = vmatpush.bf16.msra.mxu0 %v1110
    %1278 = vmatpush.bf16.msra.mxu0 %v1109
    %1279 = vmatpush.bf16.msra.mxu0 %v1108
    %1280 = vmatpush.bf16.msra.mxu0 %v1107
    %1281 = vmatpush.bf16.msra.mxu0 %v1106
    %1282 = vmatpush.bf16.msra.mxu0 %v1105
    %1283 = vmatmul.bf16.gmra.mxu0 %v1259
    %v1284 = vpop.f32.mrf.mxu0
    %v1285 = vadd.f32 %v1150, %v1284
    %v1286 = vpop.f32.mrf.mxu0
    %v1287 = vadd.f32 %v1155, %v1286
    %1288 = vmatmul.bf16.gmra.mxu0 %v1260
    %v1289 = vpop.f32.mrf.mxu0
    %v1290 = vadd.f32 %v1160, %v1289
    %v1291 = vpop.f32.mrf.mxu0
    %v1292 = vadd.f32 %v1165, %v1291
    %1293 = vmatmul.bf16.gmra.mxu0 %v1261
    %v1294 = vpop.f32.mrf.mxu0
    %v1295 = vadd.f32 %v1170, %v1294
    %v1296 = vpop.f32.mrf.mxu0
    %v1297 = vadd.f32 %v1175, %v1296
    %1298 = vmatmul.bf16.gmra.mxu0 %v1262
    %v1299 = vpop.f32.mrf.mxu0
    %v1300 = vadd.f32 %v1180, %v1299
    %v1301 = vpop.f32.mrf.mxu0
    %v1302 = vadd.f32 %v1185, %v1301
    %1303 = vmatmul.bf16.gmra.mxu0 %v1263
    %v1304 = vpop.f32.mrf.mxu0
    %v1305 = vadd.f32 %v1190, %v1304
    %v1306 = vpop.f32.mrf.mxu0
    %v1307 = vadd.f32 %v1195, %v1306
    %1308 = vmatmul.bf16.gmra.mxu0 %v1264
    %v1309 = vpop.f32.mrf.mxu0
    %v1310 = vadd.f32 %v1200, %v1309
    %v1311 = vpop.f32.mrf.mxu0
    %v1312 = vadd.f32 %v1205, %v1311
    %1313 = vmatmul.bf16.gmra.mxu0 %v1265
    %v1314 = vpop.f32.mrf.mxu0
    %v1315 = vadd.f32 %v1210, %v1314
    %v1316 = vpop.f32.mrf.mxu0
    %v1317 = vadd.f32 %v1215, %v1316
    %1318 = vmatmul.bf16.gmra.mxu0 %v1266
    %v1319 = vpop.f32.mrf.mxu0
    %v1320 = vadd.f32 %v1220, %v1319
    %v1321 = vpop.f32.mrf.mxu0
    %v1322 = vadd.f32 %v1225, %v1321
    %1323 = vdwg.mxu0
    %vm1324 = vcmp.gt.f32.partialorder %v1285, 0.0
    %vm1325 = vcmp.gt.f32.partialorder %v1287, 0.0
    %vm1326 = vcmp.gt.f32.partialorder %v1290, 0.0
    %vm1327 = vcmp.gt.f32.partialorder %v1292, 0.0
    %vm1328 = vcmp.gt.f32.partialorder %v1295, 0.0
    %vm1329 = vcmp.gt.f32.partialorder %v1297, 0.0
    %vm1330 = vcmp.gt.f32.partialorder %v1300, 0.0
    %vm1331 = vcmp.gt.f32.partialorder %v1302, 0.0
    %vm1332 = vcmp.gt.f32.partialorder %v1305, 0.0
    %vm1333 = vcmp.gt.f32.partialorder %v1307, 0.0
    %vm1334 = vcmp.gt.f32.partialorder %v1310, 0.0
    %vm1335 = vcmp.gt.f32.partialorder %v1312, 0.0
    %vm1336 = vcmp.gt.f32.partialorder %v1315, 0.0
    %vm1337 = vcmp.gt.f32.partialorder %v1317, 0.0
    %vm1338 = vcmp.gt.f32.partialorder %v1320, 0.0
    %vm1339 = vcmp.gt.f32.partialorder %v1322, 0.0
    %v1340 = vmul.f32 %v1285, 0.01
    %v1341 = vmul.f32 %v1287, 0.01
    %v1342 = vmul.f32 %v1290, 0.01
    %v1343 = vmul.f32 %v1292, 0.01
    %v1344 = vmul.f32 %v1295, 0.01
    %v1345 = vmul.f32 %v1297, 0.01
    %v1346 = vmul.f32 %v1300, 0.01
    %v1347 = vmul.f32 %v1302, 0.01
    %v1348 = vmul.f32 %v1305, 0.01
    %v1349 = vmul.f32 %v1307, 0.01
    %v1350 = vmul.f32 %v1310, 0.01
    %v1351 = vmul.f32 %v1312, 0.01
    %v1352 = vmul.f32 %v1315, 0.01
    %v1353 = vmul.f32 %v1317, 0.01
    %v1354 = vmul.f32 %v1320, 0.01
    %v1355 = vmul.f32 %v1322, 0.01
    %v1356 = vsel %vm1324, %v1285, %v1340
    %v1357 = vsel %vm1325, %v1287, %v1341
    %v1358 = vsel %vm1326, %v1290, %v1342
    %v1359 = vsel %vm1327, %v1292, %v1343
    %v1360 = vsel %vm1328, %v1295, %v1344
    %v1361 = vsel %vm1329, %v1297, %v1345
    %v1362 = vsel %vm1330, %v1300, %v1346
    %v1363 = vsel %vm1331, %v1302, %v1347
    %v1364 = vsel %vm1332, %v1305, %v1348
    %v1365 = vsel %vm1333, %v1307, %v1349
    %v1366 = vsel %vm1334, %v1310, %v1350
    %v1367 = vsel %vm1335, %v1312, %v1351
    %v1368 = vsel %vm1336, %v1315, %v1352
    %v1369 = vsel %vm1337, %v1317, %v1353
    %v1370 = vsel %vm1338, %v1320, %v1354
    %v1371 = vsel %vm1339, %v1322, %v1355
    %v1372 = vpack.c.bf16 %v1357, %v1356
    %v1373 = vpack.c.bf16 %v1359, %v1358
    %v1374 = vpack.c.bf16 %v1361, %v1360
    %v1375 = vpack.c.bf16 %v1363, %v1362
    %v1376 = vpack.c.bf16 %v1365, %v1364
    %v1377 = vpack.c.bf16 %v1367, %v1366
    %v1378 = vpack.c.bf16 %v1369, %v1368
    %v1379 = vpack.c.bf16 %v1371, %v1370
    %v1380 = vld [vmem:[%s4] sm:$0xf]
    %v1381 = vld [vmem:[%s5] sm:$0xff]
    %1383 = vset.pattern.permute.xlu0 0
    %1384 = vperm.xlu0 %1383, %v1381
    %v1385 = vpop.permute.xlu0 %1384
    %1387 = vmatpush.bf16.msra.mxu0 %v1379
    %1388 = vmatpush.bf16.msra.mxu0 %v1378
    %1389 = vmatpush.bf16.msra.mxu0 %v1377
    %1390 = vmatpush.bf16.msra.mxu0 %v1376
    %1391 = vmatpush.bf16.msra.mxu0 %v1375
    %1392 = vmatpush.bf16.msra.mxu0 %v1374
    %1393 = vmatpush.bf16.msra.mxu0 %v1373
    %1394 = vmatpush.bf16.msra.mxu0 %v1372
    %1395 = vmatmul.bf16.gmra.mxu0 %v1380
    %v1396 = vpop.f32.mrf.mxu0
    %v1397 = vadd.f32 %v1385, %v1396
    %v1398 = vpop.f32.mrf.mxu0
    %1399 = vdwg.mxu0
    %v1401 = vrot.slane %v1397, 1
    %v1403 = vsub.f32 %v1397, %v1401
    %v1404 = vxor.u32 %v1403, 2147483648
    %v1405 = vmul.f32 %v1404, 1.442695
    %v1406 = vpow.pop %v1405
    %v1407 = vadd.f32 %v1406, 1.0
    %v1408 = vrcp.pop %v1407
    %v1409 = vmul.f32 %v1407, %v1408
    %v1410 = vsub.f32 1.0, %v1409
    %v1411 = vmul.f32 %v1408, %v1410
    %v1412 = vadd.f32 %v1408, %v1411
    %vm1413 = vweird.f32 %v1407
    %vm1414 = vweird.f32 %v1408
    %vm1415 = vmor %vm1413, %vm1414
    %v1416 = vsel %vm1415, %v1408, %v1412
    %v1417 = vand.u32 2147483647, %v1407
    %vm1418 = vcmp.eq.f32.partialorder %v1417, 8.507059e+37
    %v1419 = vand.u32 %v1407, 2147483648
    %v1420 = vor.u32 1.1754944e-38, %v1419
    %v1421 = vsel %vm1418, %v1420, %v1416
    %v1422 = vmul.f32 1.0, %v1421
    %v1423 = vsub.f32 1.0, %v1422
    %1424 = vset.pattern.permute.xlu0 1
    %1425 = vperm.xlu0 %1424, %v1381
    %v1426 = vpop.permute.xlu0 %1425
    %v1428 = vadd.f32 %v1397, %v1426
    %v1429 = vperm.slane %v1422, 0
    %1430 = vset.pattern.permute.xlu0 2
    %1431 = vperm.xlu0 %1430, %v1381
    %v1432 = vpop.permute.xlu0 %1431
    %v1434 = vmul.f32 %v1429, %v1432
    %v1435 = vadd.f32 %v1428, %v1434
    %v1436 = vxor.u32 %v1435, 2147483648
    %v1437 = vmul.f32 %v1436, 1.442695
    %v1438 = vpow.pop %v1437
    %v1439 = vadd.f32 %v1438, 1.0
    %v1440 = vrcp.pop %v1439
    %v1441 = vmul.f32 %v1439, %v1440
    %v1442 = vsub.f32 1.0, %v1441
    %v1443 = vmul.f32 %v1440, %v1442
    %v1444 = vadd.f32 %v1440, %v1443
    %vm1445 = vweird.f32 %v1439
    %vm1446 = vweird.f32 %v1440
    %vm1447 = vmor %vm1445, %vm1446
    %v1448 = vsel %vm1447, %v1440, %v1444
    %v1449 = vand.u32 2147483647, %v1439
    %vm1450 = vcmp.eq.f32.partialorder %v1449, 8.507059e+37
    %v1451 = vand.u32 %v1439, 2147483648
    %v1452 = vor.u32 1.1754944e-38, %v1451
    %v1453 = vsel %vm1450, %v1452, %v1448
    %v1454 = vmul.f32 1.0, %v1453
    %v1455 = vlaneseq
    %v1456 = vshrl.u32 %v1455, 7
    %vm1457 = vcmp.eq.s32.totalorder %v1456, 0
    %vm1458 = vcmp.eq.s32.totalorder %v1456, 1
    %vm1459 = vcmp.eq.s32.totalorder %v1456, 4
    %v1460 = vperm.slane %v1454, 4
    %v1461 = vsel %vm1459, %v1460, %v1435
    %v1462 = vperm.slane %v1423, 0
    %v1463 = vsel %vm1458, %v1462, %v1461
    %v1464 = vsel %vm1457, %v1429, %v1463
    %1465 = vst [vmem:[#allocation2] sm:$0xff] %v1464
    // Predicated region
    $region26: #{tpu_custom_call.1} parent=1 // pred_check
      _
    $region27: #{tpu_custom_call.1} parent=1 // pred_check_branch
      %1467 = sbr.rel (0) target = $region29
    $region28: #{tpu_custom_call.1} parent=1 // pred_region
      %1469 = vsyncadd [#allocation3], 0
      %s1471 = sshll.u32 [#allocation2], 4
      %s1472 = int_to_ptr.vmem [resolvable:$true] %s1471
      %s1473 = sshll.u32 %s6, 4
      %s1474 = int_to_ptr.hbm [resolvable:$true] %s1473
      %1476 = dma.vmem_to_hbm [thread:$0]  %s1472, 128, %s1474, [#allocation3]
    $region29: #{tpu_custom_call.1} parent=1 // pred_fallthru
      _
    // Predicated region
    $region30: #{tpu_custom_call.1} parent=1 // pred_check
      _
    $region31: #{tpu_custom_call.1} parent=1 // pred_check_branch
      %1478 = sbr.rel (0) target = $region33
    $region32: #{tpu_custom_call.1} parent=1 // pred_region
      %1480 = dma.done [#allocation3], 128
    $region33: #{tpu_custom_call.1} parent=1 // pred_fallthru
      _
    %1481 = vsyncpa [#allocation3], 1

</llo_original>
